<compile_context>
chip_gen: v7x
topology: tpu7x:2x2x1
jax: 0.10.0
libtpu: 0.0.40
codegen_flags: <defaults>
</compile_context>

<pallas_src>
import functools
import math

import jax
import jax.numpy as jnp
from jax import lax
from jax.experimental import pallas as pl
from jax.experimental.pallas import tpu as pltpu


# ----------------------------- helpers ------------------------------------ #

def _cdiv(a, b):
    return -(-a // b)


def _sm_tile_packed(q_ref, k_ref, v_ref, g_heads, kv_chunk):
    """Softmax-attention contribution of one kv tile, lane-packed [Cv, G*Lq] f32."""
    tk = k_ref.shape[-1]
    n_chunks = tk // kv_chunk
    outs = []
    for g in range(g_heads):              # static; each head's temps die per-iter
        q_g = q_ref[g]                    # [Ck, Lq]
        parts = []
        for c in range(n_chunks):         # inner kv-chunk loop: logits stay in vregs
            k_c = k_ref[g, :, c * kv_chunk:(c + 1) * kv_chunk]   # [Ck, Tc]
            v_c = v_ref[g, :, c * kv_chunk:(c + 1) * kv_chunk]   # [Cv, Tc]
            # logits tile [Lq, Tc]: kv on the 128-lane axis (lane-dense),
            # Lq on sublanes.  Contract C_k (dim 0 of both operands).
            s = lax.dot_general(q_g, k_c, (((0,), (0,)), ((), ())),
                                preferred_element_type=jnp.float32)
            # nn.Softmax(dim=2) on [B,H,Lq,Lkv] == normalize over the *query*
            # axis, which is axis 0 here.  Exact division (no approx recip).
            m = jnp.max(s, axis=0, keepdims=True)
            e = jnp.exp(s - m)
            w = e / jnp.sum(e, axis=0, keepdims=True)
            # v @ w^T for this kv chunk: contract kv (dim 1 of both) -> [Cv, Lq]
            parts.append(lax.dot_general(v_c, w.astype(v_c.dtype),
                                         (((1,), (1,)), ((), ())),
                                         preferred_element_type=jnp.float32))
        out_g = parts[0]
        for p in parts[1:]:
            out_g = out_g + p
        outs.append(out_g)
    # Lane-pack all heads of this block into one [Cv, G*Lq] slab.
    return jnp.concatenate(outs, axis=-1)


def _lin_tile_kv_packed(k_ref, v_ref, g_heads):
    """k @ v^T contribution of one kv tile, lane-packed [Ck, G*Cv] f32."""
    kvs = []
    for g in range(g_heads):
        kvs.append(lax.dot_general(k_ref[g], v_ref[g], (((1,), (1,)), ((), ())),
                                   preferred_element_type=jnp.float32))
    return jnp.concatenate(kvs, axis=-1)


def _lin_finalize(q_ref, kv_packed, g_heads, cv):
    lq = q_ref.shape[-1]
    scale = 1.0 / lq
    outs = []
    for g in range(g_heads):
        kv_g = kv_packed[:, g * cv:(g + 1) * cv] * scale              # [Ck, Cv]
        outs.append(jnp.dot(kv_g, q_ref[g].astype(jnp.float32),
                            preferred_element_type=jnp.float32))      # [Ck, Lq]
    return jnp.concatenate(outs, axis=-1)                             # [Ck, G*Lq]


# ----------------------------- kernels ------------------------------------ #

def _softmax_kernel_single(q_ref, k_ref, v_ref, o_ref, *, g_heads, kv_chunk):
    # nk == 1: whole Lkv in one tile -> write straight into the output block.
    o_ref[0] = _sm_tile_packed(q_ref, k_ref, v_ref, g_heads,
                               kv_chunk).astype(o_ref.dtype)


def _softmax_kernel_multi(q_ref, k_ref, v_ref, o_ref, acc_ref, *, g_heads, kv_chunk):
    # nk > 1: lane-packed f32 accumulator resident over the Lkv grid axis.
    j = pl.program_id(1)
    packed = _sm_tile_packed(q_ref, k_ref, v_ref, g_heads, kv_chunk)

    @pl.when(j == 0)
    def _():
        acc_ref[...] = packed

    @pl.when(j > 0)
    def _():
        acc_ref[...] += packed

    @pl.when(j == pl.num_programs(1) - 1)
    def _():
        o_ref[0] = acc_ref[...].astype(o_ref.dtype)


def _linear_kernel_single(q_ref, k_ref, v_ref, o_ref, *, g_heads):
    cv = v_ref.shape[1]
    kv_packed = _lin_tile_kv_packed(k_ref, v_ref, g_heads)
    o_ref[0] = _lin_finalize(q_ref, kv_packed, g_heads, cv).astype(o_ref.dtype)


def _linear_kernel_multi(q_ref, k_ref, v_ref, o_ref, acc_ref, *, g_heads):
    cv = v_ref.shape[1]
    j = pl.program_id(1)
    packed = _lin_tile_kv_packed(k_ref, v_ref, g_heads)

    @pl.when(j == 0)
    def _():
        acc_ref[...] = packed

    @pl.when(j > 0)
    def _():
        acc_ref[...] += packed

    @pl.when(j == pl.num_programs(1) - 1)
    def _():
        o_ref[0] = _lin_finalize(q_ref, acc_ref[...], g_heads, cv).astype(o_ref.dtype)


# ----------------------------- wrapper ------------------------------------ #

def dot_product_attention(q, k, v, *, use_softmax=True, dropout_rate=0.0,
                          heads_per_block=32, kv_tile_cap=2048):
    """Pallas equivalent of DotProductAttention.forward (inference)."""
    # TODO(synk): attention-weight dropout (dropout_rate > 0) is not applied;
    # the module's default config (dropout_rate=0.0) needs none.
    del dropout_rate

    B, H, Ck, Lq = q.shape
    Lkv = k.shape[-1]
    Cv = v.shape[2]
    BH = B * H
    itemsize = q.dtype.itemsize

    # ---- kv tile (accumulation axis).  No divisor requirement: pad Lkv. ----
    kv_tile_cap = max(128, (kv_tile_cap // 128) * 128)
    if Lkv <= kv_tile_cap:
        Tk, Lkv_pad = Lkv, Lkv            # one ragged tile == full Lkv
    else:
        Tk = kv_tile_cap                  # 128-multiple DMA tile
        Lkv_pad = _cdiv(Lkv, Tk) * Tk     # zero columns contribute nothing
    nk = Lkv_pad // Tk
    # Inner compute chunk keeps the [Lq, chunk] logits resident in vregs while
    # the BlockSpec DMA tile stays large.
    kv_chunk = 512 if (Tk > 512 and Tk % 512 == 0) else Tk

    # ---- heads per block: G*Lq must be lane-dense (multiple of 128). -------
    base = 128 // math.gcd(128, Lq)       # smallest G with (G*Lq) % 128 == 0
    max_mult = max(1, min(heads_per_block // base, _cdiv(BH, base)))

    try:                                   # size blocks for the chip we run on
        phys_vmem = pltpu.get_tpu_info().vmem_capacity_bytes
    except Exception:                      # fall back to the smallest (v7x) VMEM
        phys_vmem = 64 * 2**20

    def working_set(g):                    # double-buffered in/out blocks
        blk_in = g * (Ck * Lq + (Ck + Cv) * Tk) * itemsize
        blk_out = max(Ck, Cv) * g * Lq * itemsize
        return 2 * (blk_in + blk_out)

    budget = int(phys_vmem * 0.6)          # headroom for compiler scratch
    mult = max_mult
    while mult > 1 and working_set(base * mult) > budget:
        mult -= 1
    G = base * mult
    BH_pad = _cdiv(BH, G) * G              # zero-pad heads; padded heads discarded

    # ---- flatten / pad inputs (layout plumbing, outside the kernel) --------
    qf = q.reshape(BH, Ck, Lq)
    kf = k.reshape(BH, Ck, Lkv)
    vf = v.reshape(BH, Cv, Lkv)
    if BH_pad != BH:
        qf = jnp.pad(qf, ((0, BH_pad - BH), (0, 0), (0, 0)))
        kf = jnp.pad(kf, ((0, BH_pad - BH), (0, 0), (0, 0)))
        vf = jnp.pad(vf, ((0, BH_pad - BH), (0, 0), (0, 0)))
    if Lkv_pad != Lkv:
        kf = jnp.pad(kf, ((0, 0), (0, 0), (0, Lkv_pad - Lkv)))
        vf = jnp.pad(vf, ((0, 0), (0, 0), (0, Lkv_pad - Lkv)))

    # ---- kernel / scratch selection -----------------------------------------
    if use_softmax:
        out_c = Cv
        flops = 2 * BH * Lq * Lkv * (Ck + Cv)
        transcendentals = BH * Lq * Lkv
        if nk == 1:
            kernel = functools.partial(_softmax_kernel_single,
                                       g_heads=G, kv_chunk=kv_chunk)
            scratch, acc_bytes = [], 0
        else:
            kernel = functools.partial(_softmax_kernel_multi,
                                       g_heads=G, kv_chunk=kv_chunk)
            scratch = [pltpu.VMEM((Cv, G * Lq), jnp.float32)]
            acc_bytes = 4 * Cv * G * Lq
    else:
        assert Cv == Ck, "use_softmax=False requires channels_vs == channels_ks"
        out_c = Ck
        flops = 2 * BH * Ck * Cv * (Lkv + Lq)
        transcendentals = 0
        if nk == 1:
            kernel = functools.partial(_linear_kernel_single, g_heads=G)
            scratch, acc_bytes = [], 0
        else:
            kernel = functools.partial(_linear_kernel_multi, g_heads=G)
            scratch = [pltpu.VMEM((Ck, G * Cv), jnp.float32)]
            acc_bytes = 4 * Ck * G * Cv

    bytes_accessed = (qf.size + kf.size + vf.size + BH * out_c * Lq) * itemsize
    vmem_need = working_set(G) + acc_bytes
    # Keep the scoped limit well under physical VMEM (v7x has only 64 MiB/TC).
    vmem_limit = int(min(max(32 * 2**20, 2 * vmem_need), int(phys_vmem * 0.75)))

    out_flat = pl.pallas_call(
        kernel,
        out_shape=jax.ShapeDtypeStruct((BH_pad // G, out_c, G * Lq), q.dtype),
        grid_spec=pltpu.PrefetchScalarGridSpec(
            num_scalar_prefetch=0,
            grid=(BH_pad // G, nk),
            in_specs=[
                pl.BlockSpec((G, Ck, Lq), lambda i, j: (i, 0, 0)),
                pl.BlockSpec((G, Ck, Tk), lambda i, j: (i, 0, j)),
                pl.BlockSpec((G, Cv, Tk), lambda i, j: (i, 0, j)),
            ],
            out_specs=pl.BlockSpec((1, out_c, G * Lq), lambda i, j: (i, 0, 0)),
            scratch_shapes=scratch,
        ),
        compiler_params=pltpu.CompilerParams(
            dimension_semantics=("parallel", "arbitrary"),
            vmem_limit_bytes=vmem_limit),
        cost_estimate=pl.CostEstimate(
            flops=flops, transcendentals=transcendentals,
            bytes_accessed=bytes_accessed),
    )(qf, kf, vf)

    # Un-pack the lane-packed output [BH_pad//G, C, G*Lq] -> [B, H, C, Lq].
    out = out_flat.reshape(BH_pad // G, out_c, G, Lq)
    out = jnp.transpose(out, (0, 2, 1, 3)).reshape(BH_pad, out_c, Lq)
    return out[:BH].reshape(B, H, out_c, Lq)


# ----------------------------- reference ---------------------------------- #

def _reference(q, k, v, use_softmax=True):
    if use_softmax:
        logits = jnp.einsum("bhcq,bhck->bhqk", q, k)
        w = jax.nn.softmax(logits, axis=2)            # softmax over Lq (dim=2)
        return jnp.einsum("bhvk,bhqk->bhvq", v, w)
    kv = jnp.einsum("bhck,bhvk->bhcv", k, v) / jnp.float32(q.shape[-1])
    return jnp.einsum("bhcv,bhvq->bhcq", kv, q)       # needs C_v == C_k


# ----------------------------- main ---------------------------------------- #

if __name__ == "__main__":
    key = jax.random.PRNGKey(0)
    kq, kk, kv_ = jax.random.split(key, 3)

    B, H, Ck, Cv, Lq, Lkv = 2, 2, 32, 48, 16, 24
    # Moderate-magnitude inputs; tolerances below cover MXU default-precision
    # f32 matmuls vs the XLA dot path (real layout/index bugs give O(1) errors).
    q = 0.5 * jax.random.normal(kq, (B, H, Ck, Lq), dtype=jnp.float32)
    k = 0.5 * jax.random.normal(kk, (B, H, Ck, Lkv), dtype=jnp.float32)
    v = 0.5 * jax.random.normal(kv_, (B, H, Cv, Lkv), dtype=jnp.float32)
    tol = dict(atol=2e-2, rtol=2e-2)

    # 1) softmax branch, single kv tile (nk == 1, the common case).
    ref = _reference(q, k, v, use_softmax=True)
    out = jax.block_until_ready(dot_product_attention(q, k, v, use_softmax=True))
    assert out.shape == (B, H, Cv, Lq), out.shape
    assert jnp.allclose(out, ref, **tol), float(jnp.max(jnp.abs(out - ref)))

    # 2) softmax branch, multi-kv-tile accumulation path (nk > 1, padded Lkv).
    Lkv2 = 300
    k2 = 0.5 * jax.random.normal(kk, (B, H, Ck, Lkv2), dtype=jnp.float32)
    v2 = 0.5 * jax.random.normal(kv_, (B, H, Cv, Lkv2), dtype=jnp.float32)
    ref2 = _reference(q, k2, v2, use_softmax=True)
    out2 = jax.block_until_ready(
        dot_product_attention(q, k2, v2, use_softmax=True, kv_tile_cap=128))
    assert jnp.allclose(out2, ref2, **tol), float(jnp.max(jnp.abs(out2 - ref2)))

    # 3) use_softmax=False branch (requires C_v == C_k), single kv tile.
    v3 = 0.5 * jax.random.normal(kv_, (B, H, Ck, Lkv), dtype=jnp.float32)
    ref3 = _reference(q, k, v3, use_softmax=False)
    out3 = jax.block_until_ready(dot_product_attention(q, k, v3, use_softmax=False))
    assert out3.shape == (B, H, Ck, Lq), out3.shape
    assert jnp.allclose(out3, ref3, **tol), float(jnp.max(jnp.abs(out3 - ref3)))

    # 4) use_softmax=False branch, multi-kv-tile accumulation path.
    v4 = 0.5 * jax.random.normal(kv_, (B, H, Ck, Lkv2), dtype=jnp.float32)
    ref4 = _reference(q, k2, v4, use_softmax=False)
    out4 = jax.block_until_ready(
        dot_product_attention(q, k2, v4, use_softmax=False, kv_tile_cap=128))
    assert jnp.allclose(out4, ref4, **tol), float(jnp.max(jnp.abs(out4 - ref4)))

    print("KERNEL_OK")
</pallas_src>

<mosaic_0001>
module attributes {stable_mosaic.version = 11 : i64} {
  func.func @_softmax_kernel_single(%arg0: i32, %arg1: i32, %arg2: memref<8x32x16xf32, #tpu.memory_space<vmem>>, %arg3: memref<8x32x24xf32, #tpu.memory_space<vmem>>, %arg4: memref<8x48x24xf32, #tpu.memory_space<vmem>>, %arg5: memref<1x48x128xf32, #tpu.memory_space<vmem>>) attributes {dimension_semantics = [#tpu.dimension_semantics<parallel>, #tpu.dimension_semantics<arbitrary>], iteration_bounds = array<i64: 1, 1>, scalar_prefetch = 0 : i64, scratch_operands = 0 : i64, tpu.core_type = #tpu.core_type<tc>, window_params = [{transform_indices = @transform_0, window_bounds = array<i64: 8, 32, 16>}, {transform_indices = @transform_1, window_bounds = array<i64: 8, 32, 24>}, {transform_indices = @transform_2, window_bounds = array<i64: 8, 48, 24>}, {transform_indices = @transform_3, window_bounds = array<i64: 1, 48, 128>}]} {
    %c0 = arith.constant 0 : index
    %c0_0 = arith.constant 0 : index
    %c0_1 = arith.constant 0 : index
    %0 = vector.load %arg2[%c0, %c0_0, %c0_1] : memref<8x32x16xf32, #tpu.memory_space<vmem>>, vector<1x32x16xf32>
    %1 = vector.shape_cast %0 : vector<1x32x16xf32> to vector<32x16xf32>
    %c0_2 = arith.constant 0 : index
    %c0_3 = arith.constant 0 : index
    %c0_4 = arith.constant 0 : index
    %2 = vector.load %arg3[%c0_2, %c0_3, %c0_4] : memref<8x32x24xf32, #tpu.memory_space<vmem>>, vector<1x32x24xf32>
    %3 = vector.shape_cast %2 : vector<1x32x24xf32> to vector<32x24xf32>
    %c0_5 = arith.constant 0 : index
    %c0_6 = arith.constant 0 : index
    %c0_7 = arith.constant 0 : index
    %4 = vector.load %arg4[%c0_5, %c0_6, %c0_7] : memref<8x48x24xf32, #tpu.memory_space<vmem>>, vector<1x48x24xf32>
    %5 = vector.shape_cast %4 : vector<1x48x24xf32> to vector<48x24xf32>
    %cst = arith.constant dense<0.000000e+00> : vector<16x24xf32>
    %6 = tpu.matmul %1, %3, %cst {dimension_numbers = #tpu.dot_dimension_numbers<[0], [0], [1], [1], [0, 1, 1, 1], [], []>} : vector<32x16xf32>, vector<32x24xf32>, vector<16x24xf32> -> vector<16x24xf32>
    %cst_8 = arith.constant dense<0xFF800000> : vector<24xf32>
    %7 = vector.multi_reduction <maximumf>, %6, %cst_8 [0] : vector<16x24xf32> to vector<24xf32>
    %8 = vector.shape_cast %7 : vector<24xf32> to vector<1x24xf32>
    %9 = vector.broadcast %8 : vector<1x24xf32> to vector<16x24xf32>
    %10 = arith.subf %6, %9 : vector<16x24xf32>
    %11 = math.exp %10 : vector<16x24xf32>
    %cst_9 = arith.constant dense<0.000000e+00> : vector<24xf32>
    %12 = vector.multi_reduction <add>, %11, %cst_9 [0] : vector<16x24xf32> to vector<24xf32>
    %13 = vector.shape_cast %12 : vector<24xf32> to vector<1x24xf32>
    %14 = vector.broadcast %13 : vector<1x24xf32> to vector<16x24xf32>
    %15 = arith.divf %11, %14 : vector<16x24xf32>
    %cst_10 = arith.constant dense<0.000000e+00> : vector<48x16xf32>
    %16 = tpu.matmul %5, %15, %cst_10 {dimension_numbers = #tpu.dot_dimension_numbers<[1], [1], [0], [0], [0, 0, 1, 0], [], []>} : vector<48x24xf32>, vector<16x24xf32>, vector<48x16xf32> -> vector<48x16xf32>
    %c1 = arith.constant 1 : index
    %c0_11 = arith.constant 0 : index
    %c0_12 = arith.constant 0 : index
    %17 = vector.load %arg2[%c1, %c0_11, %c0_12] : memref<8x32x16xf32, #tpu.memory_space<vmem>>, vector<1x32x16xf32>
    %18 = vector.shape_cast %17 : vector<1x32x16xf32> to vector<32x16xf32>
    %c1_13 = arith.constant 1 : index
    %c0_14 = arith.constant 0 : index
    %c0_15 = arith.constant 0 : index
    %19 = vector.load %arg3[%c1_13, %c0_14, %c0_15] : memref<8x32x24xf32, #tpu.memory_space<vmem>>, vector<1x32x24xf32>
    %20 = vector.shape_cast %19 : vector<1x32x24xf32> to vector<32x24xf32>
    %c1_16 = arith.constant 1 : index
    %c0_17 = arith.constant 0 : index
    %c0_18 = arith.constant 0 : index
    %21 = vector.load %arg4[%c1_16, %c0_17, %c0_18] : memref<8x48x24xf32, #tpu.memory_space<vmem>>, vector<1x48x24xf32>
    %22 = vector.shape_cast %21 : vector<1x48x24xf32> to vector<48x24xf32>
    %cst_19 = arith.constant dense<0.000000e+00> : vector<16x24xf32>
    %23 = tpu.matmul %18, %20, %cst_19 {dimension_numbers = #tpu.dot_dimension_numbers<[0], [0], [1], [1], [0, 1, 1, 1], [], []>} : vector<32x16xf32>, vector<32x24xf32>, vector<16x24xf32> -> vector<16x24xf32>
    %cst_20 = arith.constant dense<0xFF800000> : vector<24xf32>
    %24 = vector.multi_reduction <maximumf>, %23, %cst_20 [0] : vector<16x24xf32> to vector<24xf32>
    %25 = vector.shape_cast %24 : vector<24xf32> to vector<1x24xf32>
    %26 = vector.broadcast %25 : vector<1x24xf32> to vector<16x24xf32>
    %27 = arith.subf %23, %26 : vector<16x24xf32>
    %28 = math.exp %27 : vector<16x24xf32>
    %cst_21 = arith.constant dense<0.000000e+00> : vector<24xf32>
    %29 = vector.multi_reduction <add>, %28, %cst_21 [0] : vector<16x24xf32> to vector<24xf32>
    %30 = vector.shape_cast %29 : vector<24xf32> to vector<1x24xf32>
    %31 = vector.broadcast %30 : vector<1x24xf32> to vector<16x24xf32>
    %32 = arith.divf %28, %31 : vector<16x24xf32>
    %cst_22 = arith.constant dense<0.000000e+00> : vector<48x16xf32>
    %33 = tpu.matmul %22, %32, %cst_22 {dimension_numbers = #tpu.dot_dimension_numbers<[1], [1], [0], [0], [0, 0, 1, 0], [], []>} : vector<48x24xf32>, vector<16x24xf32>, vector<48x16xf32> -> vector<48x16xf32>
    %c2 = arith.constant 2 : index
    %c0_23 = arith.constant 0 : index
    %c0_24 = arith.constant 0 : index
    %34 = vector.load %arg2[%c2, %c0_23, %c0_24] : memref<8x32x16xf32, #tpu.memory_space<vmem>>, vector<1x32x16xf32>
    %35 = vector.shape_cast %34 : vector<1x32x16xf32> to vector<32x16xf32>
    %c2_25 = arith.constant 2 : index
    %c0_26 = arith.constant 0 : index
    %c0_27 = arith.constant 0 : index
    %36 = vector.load %arg3[%c2_25, %c0_26, %c0_27] : memref<8x32x24xf32, #tpu.memory_space<vmem>>, vector<1x32x24xf32>
    %37 = vector.shape_cast %36 : vector<1x32x24xf32> to vector<32x24xf32>
    %c2_28 = arith.constant 2 : index
    %c0_29 = arith.constant 0 : index
    %c0_30 = arith.constant 0 : index
    %38 = vector.load %arg4[%c2_28, %c0_29, %c0_30] : memref<8x48x24xf32, #tpu.memory_space<vmem>>, vector<1x48x24xf32>
    %39 = vector.shape_cast %38 : vector<1x48x24xf32> to vector<48x24xf32>
    %cst_31 = arith.constant dense<0.000000e+00> : vector<16x24xf32>
    %40 = tpu.matmul %35, %37, %cst_31 {dimension_numbers = #tpu.dot_dimension_numbers<[0], [0], [1], [1], [0, 1, 1, 1], [], []>} : vector<32x16xf32>, vector<32x24xf32>, vector<16x24xf32> -> vector<16x24xf32>
    %cst_32 = arith.constant dense<0xFF800000> : vector<24xf32>
    %41 = vector.multi_reduction <maximumf>, %40, %cst_32 [0] : vector<16x24xf32> to vector<24xf32>
    %42 = vector.shape_cast %41 : vector<24xf32> to vector<1x24xf32>
    %43 = vector.broadcast %42 : vector<1x24xf32> to vector<16x24xf32>
    %44 = arith.subf %40, %43 : vector<16x24xf32>
    %45 = math.exp %44 : vector<16x24xf32>
    %cst_33 = arith.constant dense<0.000000e+00> : vector<24xf32>
    %46 = vector.multi_reduction <add>, %45, %cst_33 [0] : vector<16x24xf32> to vector<24xf32>
    %47 = vector.shape_cast %46 : vector<24xf32> to vector<1x24xf32>
    %48 = vector.broadcast %47 : vector<1x24xf32> to vector<16x24xf32>
    %49 = arith.divf %45, %48 : vector<16x24xf32>
    %cst_34 = arith.constant dense<0.000000e+00> : vector<48x16xf32>
    %50 = tpu.matmul %39, %49, %cst_34 {dimension_numbers = #tpu.dot_dimension_numbers<[1], [1], [0], [0], [0, 0, 1, 0], [], []>} : vector<48x24xf32>, vector<16x24xf32>, vector<48x16xf32> -> vector<48x16xf32>
    %c3 = arith.constant 3 : index
    %c0_35 = arith.constant 0 : index
    %c0_36 = arith.constant 0 : index
    %51 = vector.load %arg2[%c3, %c0_35, %c0_36] : memref<8x32x16xf32, #tpu.memory_space<vmem>>, vector<1x32x16xf32>
    %52 = vector.shape_cast %51 : vector<1x32x16xf32> to vector<32x16xf32>
    %c3_37 = arith.constant 3 : index
    %c0_38 = arith.constant 0 : index
    %c0_39 = arith.constant 0 : index
    %53 = vector.load %arg3[%c3_37, %c0_38, %c0_39] : memref<8x32x24xf32, #tpu.memory_space<vmem>>, vector<1x32x24xf32>
    %54 = vector.shape_cast %53 : vector<1x32x24xf32> to vector<32x24xf32>
    %c3_40 = arith.constant 3 : index
    %c0_41 = arith.constant 0 : index
    %c0_42 = arith.constant 0 : index
    %55 = vector.load %arg4[%c3_40, %c0_41, %c0_42] : memref<8x48x24xf32, #tpu.memory_space<vmem>>, vector<1x48x24xf32>
    %56 = vector.shape_cast %55 : vector<1x48x24xf32> to vector<48x24xf32>
    %cst_43 = arith.constant dense<0.000000e+00> : vector<16x24xf32>
    %57 = tpu.matmul %52, %54, %cst_43 {dimension_numbers = #tpu.dot_dimension_numbers<[0], [0], [1], [1], [0, 1, 1, 1], [], []>} : vector<32x16xf32>, vector<32x24xf32>, vector<16x24xf32> -> vector<16x24xf32>
    %cst_44 = arith.constant dense<0xFF800000> : vector<24xf32>
    %58 = vector.multi_reduction <maximumf>, %57, %cst_44 [0] : vector<16x24xf32> to vector<24xf32>
    %59 = vector.shape_cast %58 : vector<24xf32> to vector<1x24xf32>
    %60 = vector.broadcast %59 : vector<1x24xf32> to vector<16x24xf32>
    %61 = arith.subf %57, %60 : vector<16x24xf32>
    %62 = math.exp %61 : vector<16x24xf32>
    %cst_45 = arith.constant dense<0.000000e+00> : vector<24xf32>
    %63 = vector.multi_reduction <add>, %62, %cst_45 [0] : vector<16x24xf32> to vector<24xf32>
    %64 = vector.shape_cast %63 : vector<24xf32> to vector<1x24xf32>
    %65 = vector.broadcast %64 : vector<1x24xf32> to vector<16x24xf32>
    %66 = arith.divf %62, %65 : vector<16x24xf32>
    %cst_46 = arith.constant dense<0.000000e+00> : vector<48x16xf32>
    %67 = tpu.matmul %56, %66, %cst_46 {dimension_numbers = #tpu.dot_dimension_numbers<[1], [1], [0], [0], [0, 0, 1, 0], [], []>} : vector<48x24xf32>, vector<16x24xf32>, vector<48x16xf32> -> vector<48x16xf32>
    %c4 = arith.constant 4 : index
    %c0_47 = arith.constant 0 : index
    %c0_48 = arith.constant 0 : index
    %68 = vector.load %arg2[%c4, %c0_47, %c0_48] : memref<8x32x16xf32, #tpu.memory_space<vmem>>, vector<1x32x16xf32>
    %69 = vector.shape_cast %68 : vector<1x32x16xf32> to vector<32x16xf32>
    %c4_49 = arith.constant 4 : index
    %c0_50 = arith.constant 0 : index
    %c0_51 = arith.constant 0 : index
    %70 = vector.load %arg3[%c4_49, %c0_50, %c0_51] : memref<8x32x24xf32, #tpu.memory_space<vmem>>, vector<1x32x24xf32>
    %71 = vector.shape_cast %70 : vector<1x32x24xf32> to vector<32x24xf32>
    %c4_52 = arith.constant 4 : index
    %c0_53 = arith.constant 0 : index
    %c0_54 = arith.constant 0 : index
    %72 = vector.load %arg4[%c4_52, %c0_53, %c0_54] : memref<8x48x24xf32, #tpu.memory_space<vmem>>, vector<1x48x24xf32>
    %73 = vector.shape_cast %72 : vector<1x48x24xf32> to vector<48x24xf32>
    %cst_55 = arith.constant dense<0.000000e+00> : vector<16x24xf32>
    %74 = tpu.matmul %69, %71, %cst_55 {dimension_numbers = #tpu.dot_dimension_numbers<[0], [0], [1], [1], [0, 1, 1, 1], [], []>} : vector<32x16xf32>, vector<32x24xf32>, vector<16x24xf32> -> vector<16x24xf32>
    %cst_56 = arith.constant dense<0xFF800000> : vector<24xf32>
    %75 = vector.multi_reduction <maximumf>, %74, %cst_56 [0] : vector<16x24xf32> to vector<24xf32>
    %76 = vector.shape_cast %75 : vector<24xf32> to vector<1x24xf32>
    %77 = vector.broadcast %76 : vector<1x24xf32> to vector<16x24xf32>
    %78 = arith.subf %74, %77 : vector<16x24xf32>
    %79 = math.exp %78 : vector<16x24xf32>
    %cst_57 = arith.constant dense<0.000000e+00> : vector<24xf32>
    %80 = vector.multi_reduction <add>, %79, %cst_57 [0] : vector<16x24xf32> to vector<24xf32>
    %81 = vector.shape_cast %80 : vector<24xf32> to vector<1x24xf32>
    %82 = vector.broadcast %81 : vector<1x24xf32> to vector<16x24xf32>
    %83 = arith.divf %79, %82 : vector<16x24xf32>
    %cst_58 = arith.constant dense<0.000000e+00> : vector<48x16xf32>
    %84 = tpu.matmul %73, %83, %cst_58 {dimension_numbers = #tpu.dot_dimension_numbers<[1], [1], [0], [0], [0, 0, 1, 0], [], []>} : vector<48x24xf32>, vector<16x24xf32>, vector<48x16xf32> -> vector<48x16xf32>
    %c5 = arith.constant 5 : index
    %c0_59 = arith.constant 0 : index
    %c0_60 = arith.constant 0 : index
    %85 = vector.load %arg2[%c5, %c0_59, %c0_60] : memref<8x32x16xf32, #tpu.memory_space<vmem>>, vector<1x32x16xf32>
    %86 = vector.shape_cast %85 : vector<1x32x16xf32> to vector<32x16xf32>
    %c5_61 = arith.constant 5 : index
    %c0_62 = arith.constant 0 : index
    %c0_63 = arith.constant 0 : index
    %87 = vector.load %arg3[%c5_61, %c0_62, %c0_63] : memref<8x32x24xf32, #tpu.memory_space<vmem>>, vector<1x32x24xf32>
    %88 = vector.shape_cast %87 : vector<1x32x24xf32> to vector<32x24xf32>
    %c5_64 = arith.constant 5 : index
    %c0_65 = arith.constant 0 : index
    %c0_66 = arith.constant 0 : index
    %89 = vector.load %arg4[%c5_64, %c0_65, %c0_66] : memref<8x48x24xf32, #tpu.memory_space<vmem>>, vector<1x48x24xf32>
    %90 = vector.shape_cast %89 : vector<1x48x24xf32> to vector<48x24xf32>
    %cst_67 = arith.constant dense<0.000000e+00> : vector<16x24xf32>
    %91 = tpu.matmul %86, %88, %cst_67 {dimension_numbers = #tpu.dot_dimension_numbers<[0], [0], [1], [1], [0, 1, 1, 1], [], []>} : vector<32x16xf32>, vector<32x24xf32>, vector<16x24xf32> -> vector<16x24xf32>
    %cst_68 = arith.constant dense<0xFF800000> : vector<24xf32>
    %92 = vector.multi_reduction <maximumf>, %91, %cst_68 [0] : vector<16x24xf32> to vector<24xf32>
    %93 = vector.shape_cast %92 : vector<24xf32> to vector<1x24xf32>
    %94 = vector.broadcast %93 : vector<1x24xf32> to vector<16x24xf32>
    %95 = arith.subf %91, %94 : vector<16x24xf32>
    %96 = math.exp %95 : vector<16x24xf32>
    %cst_69 = arith.constant dense<0.000000e+00> : vector<24xf32>
    %97 = vector.multi_reduction <add>, %96, %cst_69 [0] : vector<16x24xf32> to vector<24xf32>
    %98 = vector.shape_cast %97 : vector<24xf32> to vector<1x24xf32>
    %99 = vector.broadcast %98 : vector<1x24xf32> to vector<16x24xf32>
    %100 = arith.divf %96, %99 : vector<16x24xf32>
    %cst_70 = arith.constant dense<0.000000e+00> : vector<48x16xf32>
    %101 = tpu.matmul %90, %100, %cst_70 {dimension_numbers = #tpu.dot_dimension_numbers<[1], [1], [0], [0], [0, 0, 1, 0], [], []>} : vector<48x24xf32>, vector<16x24xf32>, vector<48x16xf32> -> vector<48x16xf32>
    %c6 = arith.constant 6 : index
    %c0_71 = arith.constant 0 : index
    %c0_72 = arith.constant 0 : index
    %102 = vector.load %arg2[%c6, %c0_71, %c0_72] : memref<8x32x16xf32, #tpu.memory_space<vmem>>, vector<1x32x16xf32>
    %103 = vector.shape_cast %102 : vector<1x32x16xf32> to vector<32x16xf32>
    %c6_73 = arith.constant 6 : index
    %c0_74 = arith.constant 0 : index
    %c0_75 = arith.constant 0 : index
    %104 = vector.load %arg3[%c6_73, %c0_74, %c0_75] : memref<8x32x24xf32, #tpu.memory_space<vmem>>, vector<1x32x24xf32>
    %105 = vector.shape_cast %104 : vector<1x32x24xf32> to vector<32x24xf32>
    %c6_76 = arith.constant 6 : index
    %c0_77 = arith.constant 0 : index
    %c0_78 = arith.constant 0 : index
    %106 = vector.load %arg4[%c6_76, %c0_77, %c0_78] : memref<8x48x24xf32, #tpu.memory_space<vmem>>, vector<1x48x24xf32>
    %107 = vector.shape_cast %106 : vector<1x48x24xf32> to vector<48x24xf32>
    %cst_79 = arith.constant dense<0.000000e+00> : vector<16x24xf32>
    %108 = tpu.matmul %103, %105, %cst_79 {dimension_numbers = #tpu.dot_dimension_numbers<[0], [0], [1], [1], [0, 1, 1, 1], [], []>} : vector<32x16xf32>, vector<32x24xf32>, vector<16x24xf32> -> vector<16x24xf32>
    %cst_80 = arith.constant dense<0xFF800000> : vector<24xf32>
    %109 = vector.multi_reduction <maximumf>, %108, %cst_80 [0] : vector<16x24xf32> to vector<24xf32>
    %110 = vector.shape_cast %109 : vector<24xf32> to vector<1x24xf32>
    %111 = vector.broadcast %110 : vector<1x24xf32> to vector<16x24xf32>
    %112 = arith.subf %108, %111 : vector<16x24xf32>
    %113 = math.exp %112 : vector<16x24xf32>
    %cst_81 = arith.constant dense<0.000000e+00> : vector<24xf32>
    %114 = vector.multi_reduction <add>, %113, %cst_81 [0] : vector<16x24xf32> to vector<24xf32>
    %115 = vector.shape_cast %114 : vector<24xf32> to vector<1x24xf32>
    %116 = vector.broadcast %115 : vector<1x24xf32> to vector<16x24xf32>
    %117 = arith.divf %113, %116 : vector<16x24xf32>
    %cst_82 = arith.constant dense<0.000000e+00> : vector<48x16xf32>
    %118 = tpu.matmul %107, %117, %cst_82 {dimension_numbers = #tpu.dot_dimension_numbers<[1], [1], [0], [0], [0, 0, 1, 0], [], []>} : vector<48x24xf32>, vector<16x24xf32>, vector<48x16xf32> -> vector<48x16xf32>
    %c7 = arith.constant 7 : index
    %c0_83 = arith.constant 0 : index
    %c0_84 = arith.constant 0 : index
    %119 = vector.load %arg2[%c7, %c0_83, %c0_84] : memref<8x32x16xf32, #tpu.memory_space<vmem>>, vector<1x32x16xf32>
    %120 = vector.shape_cast %119 : vector<1x32x16xf32> to vector<32x16xf32>
    %c7_85 = arith.constant 7 : index
    %c0_86 = arith.constant 0 : index
    %c0_87 = arith.constant 0 : index
    %121 = vector.load %arg3[%c7_85, %c0_86, %c0_87] : memref<8x32x24xf32, #tpu.memory_space<vmem>>, vector<1x32x24xf32>
    %122 = vector.shape_cast %121 : vector<1x32x24xf32> to vector<32x24xf32>
    %c7_88 = arith.constant 7 : index
    %c0_89 = arith.constant 0 : index
    %c0_90 = arith.constant 0 : index
    %123 = vector.load %arg4[%c7_88, %c0_89, %c0_90] : memref<8x48x24xf32, #tpu.memory_space<vmem>>, vector<1x48x24xf32>
    %124 = vector.shape_cast %123 : vector<1x48x24xf32> to vector<48x24xf32>
    %cst_91 = arith.constant dense<0.000000e+00> : vector<16x24xf32>
    %125 = tpu.matmul %120, %122, %cst_91 {dimension_numbers = #tpu.dot_dimension_numbers<[0], [0], [1], [1], [0, 1, 1, 1], [], []>} : vector<32x16xf32>, vector<32x24xf32>, vector<16x24xf32> -> vector<16x24xf32>
    %cst_92 = arith.constant dense<0xFF800000> : vector<24xf32>
    %126 = vector.multi_reduction <maximumf>, %125, %cst_92 [0] : vector<16x24xf32> to vector<24xf32>
    %127 = vector.shape_cast %126 : vector<24xf32> to vector<1x24xf32>
    %128 = vector.broadcast %127 : vector<1x24xf32> to vector<16x24xf32>
    %129 = arith.subf %125, %128 : vector<16x24xf32>
    %130 = math.exp %129 : vector<16x24xf32>
    %cst_93 = arith.constant dense<0.000000e+00> : vector<24xf32>
    %131 = vector.multi_reduction <add>, %130, %cst_93 [0] : vector<16x24xf32> to vector<24xf32>
    %132 = vector.shape_cast %131 : vector<24xf32> to vector<1x24xf32>
    %133 = vector.broadcast %132 : vector<1x24xf32> to vector<16x24xf32>
    %134 = arith.divf %130, %133 : vector<16x24xf32>
    %cst_94 = arith.constant dense<0.000000e+00> : vector<48x16xf32>
    %135 = tpu.matmul %124, %134, %cst_94 {dimension_numbers = #tpu.dot_dimension_numbers<[1], [1], [0], [0], [0, 0, 1, 0], [], []>} : vector<48x24xf32>, vector<16x24xf32>, vector<48x16xf32> -> vector<48x16xf32>
    %136 = tpu.concatenate %16, %33, %50, %67, %84, %101, %118, %135 in 1 : vector<48x16xf32>, vector<48x16xf32>, vector<48x16xf32>, vector<48x16xf32>, vector<48x16xf32>, vector<48x16xf32>, vector<48x16xf32>, vector<48x16xf32> -> vector<48x128xf32>
    %c0_95 = arith.constant 0 : index
    %c0_96 = arith.constant 0 : index
    %c0_97 = arith.constant 0 : index
    %137 = vector.load %arg5[%c0_95, %c0_96, %c0_97] : memref<1x48x128xf32, #tpu.memory_space<vmem>>, vector<1x48x128xf32>
    %138 = vector.shape_cast %137 : vector<1x48x128xf32> to vector<48x128xf32>
    %139 = vector.shape_cast %136 : vector<48x128xf32> to vector<1x48x128xf32>
    tpu.vector_store %arg5[%c0_95, %c0_96, %c0_97], %139 {strides = array<i32>} : memref<1x48x128xf32, #tpu.memory_space<vmem>>, vector<1x48x128xf32>,
    return
  }
  func.func @transform_0(%arg0: i32, %arg1: i32) -> (i32, i32, i32) {
    %c0_i32 = arith.constant 0 : i32
    %c0_i32_0 = arith.constant 0 : i32
    %c0_i32_1 = arith.constant 0 : i32
    return %arg0, %c0_i32, %c0_i32_0 : i32, i32, i32
  }
  func.func @transform_1(%arg0: i32, %arg1: i32) -> (i32, i32, i32) {
    %c0_i32 = arith.constant 0 : i32
    %c0_i32_0 = arith.constant 0 : i32
    return %arg0, %c0_i32, %arg1 : i32, i32, i32
  }
  func.func @transform_2(%arg0: i32, %arg1: i32) -> (i32, i32, i32) {
    %c0_i32 = arith.constant 0 : i32
    %c0_i32_0 = arith.constant 0 : i32
    return %arg0, %c0_i32, %arg1 : i32, i32, i32
  }
  func.func @transform_3(%arg0: i32, %arg1: i32) -> (i32, i32, i32) {
    %c0_i32 = arith.constant 0 : i32
    %c0_i32_0 = arith.constant 0 : i32
    %c0_i32_1 = arith.constant 0 : i32
    return %arg0, %c0_i32, %c0_i32_0 : i32, i32, i32
  }
}

</mosaic_0001>

<llo_original>
// kernel: tpu_custom_call.1
$region0: #{tpu_custom_call.1}
  #allocation0 [shape = 'u32[]', space=smem, size = 0x4, offset = 0x4, fixed_abs, tag = 'smem constant byte address 0x4 - core index']
  #allocation1 [shape = 'u32[144,128]{1,0:T(1,128)}', space=vmem, size = 0x12000, scoped, tag = 'internal scratch']
  %s0 = inlined_call_operand.vmem [shape: f32[8,32,16], index: 0, kind: input, shape index: {}]
  %s1 = inlined_call_operand.vmem [shape: f32[8,32,24], index: 1, kind: input, shape index: {}]
  %s2 = inlined_call_operand.vmem [shape: f32[8,48,24], index: 2, kind: input, shape index: {}]
  %s3 = inlined_call_operand.hbm [shape: f32[1,48,128], index: 3, kind: output, shape index: {}]
  %s4 = sld [smem:[#allocation0]]
  $region22: #{tpu_custom_call.1} parent=0
    _
  %s6 = ssub.s32 1, %s4
  %s7 = scalar_select 0, %s6, %s4
  $region1: #{tpu_custom_call.1} parent=0
    #allocation2 [shape = 'u8[24576]{0}', space=vmem, size = 0x6000, scoped, tag = 'output window, operand 0, single buffered']
    #allocation3 [shape = 's32[1]{0}', space=sflag, size = 0x4, scoped, tag = 'scoped memory for tpu_custom_call.1']
    %8 = vsyncpa [#allocation3], 0
    // Predicated region
    $region2: #{tpu_custom_call.1} parent=1 // pred_check
      _
    $region3: #{tpu_custom_call.1} parent=1 // pred_check_branch
      %10 = sbr.rel (0) target = $region5
    $region4: #{tpu_custom_call.1} parent=1 // pred_region
      _
    $region5: #{tpu_custom_call.1} parent=1 // pred_fallthru
      _
    // Predicated region
    $region6: #{tpu_custom_call.1} parent=1 // pred_check
      _
    $region7: #{tpu_custom_call.1} parent=1 // pred_check_branch
      %12 = sbr.rel (0) target = $region9
    $region8: #{tpu_custom_call.1} parent=1 // pred_region
      _
    $region9: #{tpu_custom_call.1} parent=1 // pred_fallthru
      _
    // Predicated region
    $region10: #{tpu_custom_call.1} parent=1 // pred_check
      _
    $region11: #{tpu_custom_call.1} parent=1 // pred_check_branch
      %14 = sbr.rel (0) target = $region13
    $region12: #{tpu_custom_call.1} parent=1 // pred_region
      _
    $region13: #{tpu_custom_call.1} parent=1 // pred_fallthru
      _
    %v15 = vld [vmem:[%s0] sm:$0xff]
    %v16 = vld [vmem:[%s0 + $0x8] sm:$0xff]
    %v17 = vld [vmem:[%s0 + $0x10] sm:$0xff]
    %v18 = vld [vmem:[%s0 + $0x18] sm:$0xff]
    %v19 = vld [vmem:[%s1] sm:$0xff]
    %v20 = vld [vmem:[%s1 + $0x8] sm:$0xff]
    %v21 = vld [vmem:[%s1 + $0x10] sm:$0xff]
    %v22 = vld [vmem:[%s1 + $0x18] sm:$0xff]
    %v23 = vld [vmem:[%s2] sm:$0xff]
    %v24 = vld [vmem:[%s2 + $0x8] sm:$0xff]
    %v25 = vld [vmem:[%s2 + $0x10] sm:$0xff]
    %v26 = vld [vmem:[%s2 + $0x18] sm:$0xff]
    %v27 = vld [vmem:[%s2 + $0x20] sm:$0xff]
    %v28 = vld [vmem:[%s2 + $0x28] sm:$0xff]
    %29 = vxpose.xlu0.b32.start [1/16] %v15, 128
    %30 = vxpose.xlu0.b32.cont [2/16] %v16, 128
    %31 = vxpose.xlu0.b32.cont [3/16] %v17, 128
    %32 = vxpose.xlu0.b32.cont [4/16] %v18, 128
    %33 = vxpose.xlu0.b32.cont [5/16] 0.0, 128
    %34 = vxpose.xlu0.b32.cont [6/16] 0.0, 128
    %35 = vxpose.xlu0.b32.cont [7/16] 0.0, 128
    %36 = vxpose.xlu0.b32.cont [8/16] 0.0, 128
    %37 = vxpose.xlu0.b32.cont [9/16] 0.0, 128
    %38 = vxpose.xlu0.b32.cont [10/16] 0.0, 128
    %39 = vxpose.xlu0.b32.cont [11/16] 0.0, 128
    %40 = vxpose.xlu0.b32.cont [12/16] 0.0, 128
    %41 = vxpose.xlu0.b32.cont [13/16] 0.0, 128
    %42 = vxpose.xlu0.b32.cont [14/16] 0.0, 128
    %43 = vxpose.xlu0.b32.cont [15/16] 0.0, 128
    %44 = vxpose.xlu0.b32.end [16/16] 0.0, 128
    %v45 = vpop.trf.xlu0
    %v46 = vpop.trf.xlu0
    %v47 = vpop.trf.xlu0
    %v48 = vpop.trf.xlu0
    %v49 = vpop.trf.xlu0
    %v50 = vpop.trf.xlu0
    %v51 = vpop.trf.xlu0
    %v52 = vpop.trf.xlu0
    %v53 = vpop.trf.xlu0
    %v54 = vpop.trf.xlu0
    %v55 = vpop.trf.xlu0
    %v56 = vpop.trf.xlu0
    %v57 = vpop.trf.xlu0
    %v58 = vpop.trf.xlu0
    %v59 = vpop.trf.xlu0
    %v60 = vpop.trf.xlu0
    %vm61 = vcmask 261120
    %v63 = vsel %vm61, %v45, 0
    %v66 = vsel %vm61, %v46, 0
    %68 = vmatprep.subr.mxu0 0.0
    %69 = vmatpush1.msra.mxu0 %v19
    %70 = vmatprep.subr.mxu0 0.0
    %71 = vmatpush1.msra.mxu0 %v20
    %72 = vmatprep.subr.mxu0 0.0
    %73 = vmatpush1.msra.mxu0 %v21
    %74 = vmatprep.subr.mxu0 0.0
    %75 = vmatpush1.msra.mxu0 %v22
    %76 = vmatprep.subr.mxu0 0.0
    %77 = vmatpush1.msra.mxu0 0.0
    %78 = vmatprep.subr.mxu0 0.0
    %79 = vmatpush1.msra.mxu0 0.0
    %80 = vmatprep.subr.mxu0 0.0
    %81 = vmatpush1.msra.mxu0 0.0
    %82 = vmatprep.subr.mxu0 0.0
    %83 = vmatpush1.msra.mxu0 0.0
    %84 = vmatprep.subr.mxu0 0.0
    %85 = vmatpush1.msra.mxu0 0.0
    %86 = vmatprep.subr.mxu0 0.0
    %87 = vmatpush1.msra.mxu0 0.0
    %88 = vmatprep.subr.mxu0 0.0
    %89 = vmatpush1.msra.mxu0 0.0
    %90 = vmatprep.subr.mxu0 0.0
    %91 = vmatpush1.msra.mxu0 0.0
    %92 = vmatprep.subr.mxu0 0.0
    %93 = vmatpush1.msra.mxu0 0.0
    %94 = vmatprep.subr.mxu0 0.0
    %95 = vmatpush1.msra.mxu0 0.0
    %96 = vmatprep.subr.mxu0 0.0
    %97 = vmatpush1.msra.mxu0 0.0
    %98 = vmatprep.subr.mxu0 0.0
    %99 = vmatpush1.msra.mxu0 0.0
    %100 = vmatprep.subr.mxu0 0.0
    %101 = vmatpush1.msra.mxu0 0.0
    %102 = vmatprep.subr.mxu0 0.0
    %103 = vmatpush1.msra.mxu0 0.0
    %104 = vmatprep.subr.mxu0 0.0
    %105 = vmatpush1.msra.mxu0 0.0
    %106 = vmatprep.subr.mxu0 0.0
    %107 = vmatpush1.msra.mxu0 0.0
    %108 = vmatprep.subr.mxu0 0.0
    %109 = vmatpush1.msra.mxu0 0.0
    %110 = vmatprep.subr.mxu0 0.0
    %111 = vmatpush1.msra.mxu0 0.0
    %112 = vmatprep.subr.mxu0 0.0
    %113 = vmatpush1.msra.mxu0 0.0
    %114 = vmatprep.subr.mxu0 0.0
    %115 = vmatpush1.msra.mxu0 0.0
    %116 = vmatprep.subr.mxu0 0.0
    %117 = vmatpush1.msra.mxu0 0.0
    %118 = vmatprep.subr.mxu0 0.0
    %119 = vmatpush1.msra.mxu0 0.0
    %120 = vmatprep.subr.mxu0 0.0
    %121 = vmatpush1.msra.mxu0 0.0
    %122 = vmatprep.subr.mxu0 0.0
    %123 = vmatpush1.msra.mxu0 0.0
    %124 = vmatprep.subr.mxu0 0.0
    %125 = vmatpush1.msra.mxu0 0.0
    %126 = vmatprep.subr.mxu0 0.0
    %127 = vmatpush1.msra.mxu0 0.0
    %128 = vmatprep.subr.mxu0 0.0
    %129 = vmatpush1.msra.mxu0 0.0
    %130 = vmatprep.subr.mxu0 0.0
    %131 = vmatpush1.msra.mxu0 0.0
    %132 = vmatprep.mubr.f32.mxu0 0.0
    %133 = vmatmul.mubr.f32.gmra.mrb[0].mxu0 %v63
    %v134 = vpop.f32.mrb[0].mxu0
    %v135 = vadd.f32 0.0, %v134
    %v136 = vpop.f32.mrb[0].mxu0
    %137 = vmatprep.mubr.f32.mxu0 0.0
    %138 = vmatmul.mubr.f32.gmra.mrb[0].mxu0 %v66
    %v139 = vpop.f32.mrb[0].mxu0
    %v140 = vadd.f32 0.0, %v139
    %v141 = vpop.f32.mrb[0].mxu0
    %142 = vdwg.mxu0
    %vm143 = vcmask 195584
    %v144 = vsel %vm143, %v135, -inf
    %v145 = vsel %vm143, %v140, -inf
    %v146 = vmax.f32 %v144, %v145
    %v147 = vrot.slane %v146, 4
    %v148 = vmax.f32 %v146, %v147
    %v149 = vrot.slane %v148, 2
    %v150 = vmax.f32 %v148, %v149
    %v151 = vrot.slane %v150, 1
    %v152 = vmax.f32 %v150, %v151
    %v153 = vsub.f32 %v135, %v152
    %v154 = vsub.f32 %v140, %v152
    %v155 = vmul.f32 %v153, 1.442695
    %v156 = vpow.pop %v155
    %v157 = vmul.f32 %v154, 1.442695
    %v158 = vpow.pop %v157
    %v159 = vsel %vm143, %v156, 0.0
    %v160 = vsel %vm143, %v158, 0.0
    %v161 = vadd.f32 %v159, %v160
    %v162 = vrot.slane %v161, 4
    %v163 = vadd.f32 %v161, %v162
    %v164 = vrot.slane %v163, 2
    %v165 = vadd.f32 %v163, %v164
    %v166 = vrot.slane %v165, 1
    %v167 = vadd.f32 %v165, %v166
    %v168 = vrcp.pop %v167
    %v169 = vmul.f32 %v156, %v168
    %v170 = vmul.f32 %v158, %v168
    %v172 = vsel %vm143, %v23, 0
    %v175 = vsel %vm143, %v24, 0
    %v178 = vsel %vm143, %v25, 0
    %v181 = vsel %vm143, %v26, 0
    %v184 = vsel %vm143, %v27, 0
    %v187 = vsel %vm143, %v28, 0
    %v190 = vsel %vm143, %v169, 0
    %v193 = vsel %vm143, %v170, 0
    %195 = vmatprep.subr.mxu0 0.0
    %196 = vmatpush1.xpose.msra.mxu0 %v190
    %197 = vmatprep.subr.mxu0 0.0
    %198 = vmatpush1.xpose.msra.mxu0 %v193
    %199 = vmatprep.subr.mxu0 0.0
    %200 = vmatpush1.xpose.msra.mxu0 0.0
    %201 = vmatprep.subr.mxu0 0.0
    %202 = vmatpush1.xpose.msra.mxu0 0.0
    %203 = vmatprep.subr.mxu0 0.0
    %204 = vmatpush1.xpose.msra.mxu0 0.0
    %205 = vmatprep.subr.mxu0 0.0
    %206 = vmatpush1.xpose.msra.mxu0 0.0
    %207 = vmatprep.subr.mxu0 0.0
    %208 = vmatpush1.xpose.msra.mxu0 0.0
    %209 = vmatprep.subr.mxu0 0.0
    %210 = vmatpush1.xpose.msra.mxu0 0.0
    %211 = vmatprep.subr.mxu0 0.0
    %212 = vmatpush1.xpose.msra.mxu0 0.0
    %213 = vmatprep.subr.mxu0 0.0
    %214 = vmatpush1.xpose.msra.mxu0 0.0
    %215 = vmatprep.subr.mxu0 0.0
    %216 = vmatpush1.xpose.msra.mxu0 0.0
    %217 = vmatprep.subr.mxu0 0.0
    %218 = vmatpush1.xpose.msra.mxu0 0.0
    %219 = vmatprep.subr.mxu0 0.0
    %220 = vmatpush1.xpose.msra.mxu0 0.0
    %221 = vmatprep.subr.mxu0 0.0
    %222 = vmatpush1.xpose.msra.mxu0 0.0
    %223 = vmatprep.subr.mxu0 0.0
    %224 = vmatpush1.xpose.msra.mxu0 0.0
    %225 = vmatprep.subr.mxu0 0.0
    %226 = vmatpush1.xpose.msra.mxu0 0.0
    %227 = vmatprep.subr.mxu0 0.0
    %228 = vmatpush1.xpose.msra.mxu0 0.0
    %229 = vmatprep.subr.mxu0 0.0
    %230 = vmatpush1.xpose.msra.mxu0 0.0
    %231 = vmatprep.subr.mxu0 0.0
    %232 = vmatpush1.xpose.msra.mxu0 0.0
    %233 = vmatprep.subr.mxu0 0.0
    %234 = vmatpush1.xpose.msra.mxu0 0.0
    %235 = vmatprep.subr.mxu0 0.0
    %236 = vmatpush1.xpose.msra.mxu0 0.0
    %237 = vmatprep.subr.mxu0 0.0
    %238 = vmatpush1.xpose.msra.mxu0 0.0
    %239 = vmatprep.subr.mxu0 0.0
    %240 = vmatpush1.xpose.msra.mxu0 0.0
    %241 = vmatprep.subr.mxu0 0.0
    %242 = vmatpush1.xpose.msra.mxu0 0.0
    %243 = vmatprep.subr.mxu0 0.0
    %244 = vmatpush1.xpose.msra.mxu0 0.0
    %245 = vmatprep.subr.mxu0 0.0
    %246 = vmatpush1.xpose.msra.mxu0 0.0
    %247 = vmatprep.subr.mxu0 0.0
    %248 = vmatpush1.xpose.msra.mxu0 0.0
    %249 = vmatprep.subr.mxu0 0.0
    %250 = vmatpush1.xpose.msra.mxu0 0.0
    %251 = vmatprep.subr.mxu0 0.0
    %252 = vmatpush1.xpose.msra.mxu0 0.0
    %253 = vmatprep.subr.mxu0 0.0
    %254 = vmatpush1.xpose.msra.mxu0 0.0
    %255 = vmatprep.subr.mxu0 0.0
    %256 = vmatpush1.xpose.msra.mxu0 0.0
    %257 = vmatprep.subr.mxu0 0.0
    %258 = vmatpush1.xpose.msra.mxu0 0.0
    %259 = vmatprep.mubr.f32.mxu0 0.0
    %260 = vmatmul.mubr.f32.gmra.mrb[0].mxu0 %v172
    %v261 = vpop.f32.mrb[0].mxu0
    %v262 = vadd.f32 0.0, %v261
    %v263 = vpop.f32.mrb[0].mxu0
    %264 = vmatprep.mubr.f32.mxu0 0.0
    %265 = vmatmul.mubr.f32.gmra.mrb[0].mxu0 %v175
    %v266 = vpop.f32.mrb[0].mxu0
    %v267 = vadd.f32 0.0, %v266
    %v268 = vpop.f32.mrb[0].mxu0
    %269 = vmatprep.mubr.f32.mxu0 0.0
    %270 = vmatmul.mubr.f32.gmra.mrb[0].mxu0 %v178
    %v271 = vpop.f32.mrb[0].mxu0
    %v272 = vadd.f32 0.0, %v271
    %v273 = vpop.f32.mrb[0].mxu0
    %274 = vmatprep.mubr.f32.mxu0 0.0
    %275 = vmatmul.mubr.f32.gmra.mrb[0].mxu0 %v181
    %v276 = vpop.f32.mrb[0].mxu0
    %v277 = vadd.f32 0.0, %v276
    %v278 = vpop.f32.mrb[0].mxu0
    %279 = vmatprep.mubr.f32.mxu0 0.0
    %280 = vmatmul.mubr.f32.gmra.mrb[0].mxu0 %v184
    %v281 = vpop.f32.mrb[0].mxu0
    %v282 = vadd.f32 0.0, %v281
    %v283 = vpop.f32.mrb[0].mxu0
    %284 = vmatprep.mubr.f32.mxu0 0.0
    %285 = vmatmul.mubr.f32.gmra.mrb[0].mxu0 %v187
    %v286 = vpop.f32.mrb[0].mxu0
    %v287 = vadd.f32 0.0, %v286
    %v288 = vpop.f32.mrb[0].mxu0
    %289 = vdwg.mxu0
    %s290 = scalar_lea.vmem %s0, 32
    %v291 = vld [vmem:[%s290] sm:$0xff]
    %v292 = vld [vmem:[%s290 + $0x8] sm:$0xff]
    %v293 = vld [vmem:[%s290 + $0x10] sm:$0xff]
    %v294 = vld [vmem:[%s290 + $0x18] sm:$0xff]
    %s295 = scalar_lea.vmem %s1, 32
    %v296 = vld [vmem:[%s295] sm:$0xff]
    %v297 = vld [vmem:[%s295 + $0x8] sm:$0xff]
    %v298 = vld [vmem:[%s295 + $0x10] sm:$0xff]
    %v299 = vld [vmem:[%s295 + $0x18] sm:$0xff]
    %s300 = scalar_lea.vmem %s2, 48
    %v301 = vld [vmem:[%s300] sm:$0xff]
    %v302 = vld [vmem:[%s300 + $0x8] sm:$0xff]
    %v303 = vld [vmem:[%s300 + $0x10] sm:$0xff]
    %v304 = vld [vmem:[%s300 + $0x18] sm:$0xff]
    %v305 = vld [vmem:[%s300 + $0x20] sm:$0xff]
    %v306 = vld [vmem:[%s300 + $0x28] sm:$0xff]
    %307 = vxpose.xlu0.b32.start [1/16] %v291, 128
    %308 = vxpose.xlu0.b32.cont [2/16] %v292, 128
    %309 = vxpose.xlu0.b32.cont [3/16] %v293, 128
    %310 = vxpose.xlu0.b32.cont [4/16] %v294, 128
    %311 = vxpose.xlu0.b32.cont [5/16] 0.0, 128
    %312 = vxpose.xlu0.b32.cont [6/16] 0.0, 128
    %313 = vxpose.xlu0.b32.cont [7/16] 0.0, 128
    %314 = vxpose.xlu0.b32.cont [8/16] 0.0, 128
    %315 = vxpose.xlu0.b32.cont [9/16] 0.0, 128
    %316 = vxpose.xlu0.b32.cont [10/16] 0.0, 128
    %317 = vxpose.xlu0.b32.cont [11/16] 0.0, 128
    %318 = vxpose.xlu0.b32.cont [12/16] 0.0, 128
    %319 = vxpose.xlu0.b32.cont [13/16] 0.0, 128
    %320 = vxpose.xlu0.b32.cont [14/16] 0.0, 128
    %321 = vxpose.xlu0.b32.cont [15/16] 0.0, 128
    %322 = vxpose.xlu0.b32.end [16/16] 0.0, 128
    %v323 = vpop.trf.xlu0
    %v324 = vpop.trf.xlu0
    %v325 = vpop.trf.xlu0
    %v326 = vpop.trf.xlu0
    %v327 = vpop.trf.xlu0
    %v328 = vpop.trf.xlu0
    %v329 = vpop.trf.xlu0
    %v330 = vpop.trf.xlu0
    %v331 = vpop.trf.xlu0
    %v332 = vpop.trf.xlu0
    %v333 = vpop.trf.xlu0
    %v334 = vpop.trf.xlu0
    %v335 = vpop.trf.xlu0
    %v336 = vpop.trf.xlu0
    %v337 = vpop.trf.xlu0
    %v338 = vpop.trf.xlu0
    %v340 = vsel %vm61, %v323, 0
    %v343 = vsel %vm61, %v324, 0
    %345 = vmatprep.subr.mxu0 0.0
    %346 = vmatpush1.msra.mxu0 %v296
    %347 = vmatprep.subr.mxu0 0.0
    %348 = vmatpush1.msra.mxu0 %v297
    %349 = vmatprep.subr.mxu0 0.0
    %350 = vmatpush1.msra.mxu0 %v298
    %351 = vmatprep.subr.mxu0 0.0
    %352 = vmatpush1.msra.mxu0 %v299
    %353 = vmatprep.subr.mxu0 0.0
    %354 = vmatpush1.msra.mxu0 0.0
    %355 = vmatprep.subr.mxu0 0.0
    %356 = vmatpush1.msra.mxu0 0.0
    %357 = vmatprep.subr.mxu0 0.0
    %358 = vmatpush1.msra.mxu0 0.0
    %359 = vmatprep.subr.mxu0 0.0
    %360 = vmatpush1.msra.mxu0 0.0
    %361 = vmatprep.subr.mxu0 0.0
    %362 = vmatpush1.msra.mxu0 0.0
    %363 = vmatprep.subr.mxu0 0.0
    %364 = vmatpush1.msra.mxu0 0.0
    %365 = vmatprep.subr.mxu0 0.0
    %366 = vmatpush1.msra.mxu0 0.0
    %367 = vmatprep.subr.mxu0 0.0
    %368 = vmatpush1.msra.mxu0 0.0
    %369 = vmatprep.subr.mxu0 0.0
    %370 = vmatpush1.msra.mxu0 0.0
    %371 = vmatprep.subr.mxu0 0.0
    %372 = vmatpush1.msra.mxu0 0.0
    %373 = vmatprep.subr.mxu0 0.0
    %374 = vmatpush1.msra.mxu0 0.0
    %375 = vmatprep.subr.mxu0 0.0
    %376 = vmatpush1.msra.mxu0 0.0
    %377 = vmatprep.subr.mxu0 0.0
    %378 = vmatpush1.msra.mxu0 0.0
    %379 = vmatprep.subr.mxu0 0.0
    %380 = vmatpush1.msra.mxu0 0.0
    %381 = vmatprep.subr.mxu0 0.0
    %382 = vmatpush1.msra.mxu0 0.0
    %383 = vmatprep.subr.mxu0 0.0
    %384 = vmatpush1.msra.mxu0 0.0
    %385 = vmatprep.subr.mxu0 0.0
    %386 = vmatpush1.msra.mxu0 0.0
    %387 = vmatprep.subr.mxu0 0.0
    %388 = vmatpush1.msra.mxu0 0.0
    %389 = vmatprep.subr.mxu0 0.0
    %390 = vmatpush1.msra.mxu0 0.0
    %391 = vmatprep.subr.mxu0 0.0
    %392 = vmatpush1.msra.mxu0 0.0
    %393 = vmatprep.subr.mxu0 0.0
    %394 = vmatpush1.msra.mxu0 0.0
    %395 = vmatprep.subr.mxu0 0.0
    %396 = vmatpush1.msra.mxu0 0.0
    %397 = vmatprep.subr.mxu0 0.0
    %398 = vmatpush1.msra.mxu0 0.0
    %399 = vmatprep.subr.mxu0 0.0
    %400 = vmatpush1.msra.mxu0 0.0
    %401 = vmatprep.subr.mxu0 0.0
    %402 = vmatpush1.msra.mxu0 0.0
    %403 = vmatprep.subr.mxu0 0.0
    %404 = vmatpush1.msra.mxu0 0.0
    %405 = vmatprep.subr.mxu0 0.0
    %406 = vmatpush1.msra.mxu0 0.0
    %407 = vmatprep.subr.mxu0 0.0
    %408 = vmatpush1.msra.mxu0 0.0
    %409 = vmatprep.mubr.f32.mxu0 0.0
    %410 = vmatmul.mubr.f32.gmra.mrb[0].mxu0 %v340
    %v411 = vpop.f32.mrb[0].mxu0
    %v412 = vadd.f32 0.0, %v411
    %v413 = vpop.f32.mrb[0].mxu0
    %414 = vmatprep.mubr.f32.mxu0 0.0
    %415 = vmatmul.mubr.f32.gmra.mrb[0].mxu0 %v343
    %v416 = vpop.f32.mrb[0].mxu0
    %v417 = vadd.f32 0.0, %v416
    %v418 = vpop.f32.mrb[0].mxu0
    %419 = vdwg.mxu0
    %v420 = vsel %vm143, %v412, -inf
    %v421 = vsel %vm143, %v417, -inf
    %v422 = vmax.f32 %v420, %v421
    %v423 = vrot.slane %v422, 4
    %v424 = vmax.f32 %v422, %v423
    %v425 = vrot.slane %v424, 2
    %v426 = vmax.f32 %v424, %v425
    %v427 = vrot.slane %v426, 1
    %v428 = vmax.f32 %v426, %v427
    %v429 = vsub.f32 %v412, %v428
    %v430 = vsub.f32 %v417, %v428
    %v431 = vmul.f32 %v429, 1.442695
    %v432 = vpow.pop %v431
    %v433 = vmul.f32 %v430, 1.442695
    %v434 = vpow.pop %v433
    %v435 = vsel %vm143, %v432, 0.0
    %v436 = vsel %vm143, %v434, 0.0
    %v437 = vadd.f32 %v435, %v436
    %v438 = vrot.slane %v437, 4
    %v439 = vadd.f32 %v437, %v438
    %v440 = vrot.slane %v439, 2
    %v441 = vadd.f32 %v439, %v440
    %v442 = vrot.slane %v441, 1
    %v443 = vadd.f32 %v441, %v442
    %v444 = vrcp.pop %v443
    %v445 = vmul.f32 %v432, %v444
    %v446 = vmul.f32 %v434, %v444
    %v448 = vsel %vm143, %v301, 0
    %v451 = vsel %vm143, %v302, 0
    %v454 = vsel %vm143, %v303, 0
    %v457 = vsel %vm143, %v304, 0
    %v460 = vsel %vm143, %v305, 0
    %v463 = vsel %vm143, %v306, 0
    %v466 = vsel %vm143, %v445, 0
    %v469 = vsel %vm143, %v446, 0
    %471 = vmatprep.subr.mxu0 0.0
    %472 = vmatpush1.xpose.msra.mxu0 %v466
    %473 = vmatprep.subr.mxu0 0.0
    %474 = vmatpush1.xpose.msra.mxu0 %v469
    %475 = vmatprep.subr.mxu0 0.0
    %476 = vmatpush1.xpose.msra.mxu0 0.0
    %477 = vmatprep.subr.mxu0 0.0
    %478 = vmatpush1.xpose.msra.mxu0 0.0
    %479 = vmatprep.subr.mxu0 0.0
    %480 = vmatpush1.xpose.msra.mxu0 0.0
    %481 = vmatprep.subr.mxu0 0.0
    %482 = vmatpush1.xpose.msra.mxu0 0.0
    %483 = vmatprep.subr.mxu0 0.0
    %484 = vmatpush1.xpose.msra.mxu0 0.0
    %485 = vmatprep.subr.mxu0 0.0
    %486 = vmatpush1.xpose.msra.mxu0 0.0
    %487 = vmatprep.subr.mxu0 0.0
    %488 = vmatpush1.xpose.msra.mxu0 0.0
    %489 = vmatprep.subr.mxu0 0.0
    %490 = vmatpush1.xpose.msra.mxu0 0.0
    %491 = vmatprep.subr.mxu0 0.0
    %492 = vmatpush1.xpose.msra.mxu0 0.0
    %493 = vmatprep.subr.mxu0 0.0
    %494 = vmatpush1.xpose.msra.mxu0 0.0
    %495 = vmatprep.subr.mxu0 0.0
    %496 = vmatpush1.xpose.msra.mxu0 0.0
    %497 = vmatprep.subr.mxu0 0.0
    %498 = vmatpush1.xpose.msra.mxu0 0.0
    %499 = vmatprep.subr.mxu0 0.0
    %500 = vmatpush1.xpose.msra.mxu0 0.0
    %501 = vmatprep.subr.mxu0 0.0
    %502 = vmatpush1.xpose.msra.mxu0 0.0
    %503 = vmatprep.subr.mxu0 0.0
    %504 = vmatpush1.xpose.msra.mxu0 0.0
    %505 = vmatprep.subr.mxu0 0.0
    %506 = vmatpush1.xpose.msra.mxu0 0.0
    %507 = vmatprep.subr.mxu0 0.0
    %508 = vmatpush1.xpose.msra.mxu0 0.0
    %509 = vmatprep.subr.mxu0 0.0
    %510 = vmatpush1.xpose.msra.mxu0 0.0
    %511 = vmatprep.subr.mxu0 0.0
    %512 = vmatpush1.xpose.msra.mxu0 0.0
    %513 = vmatprep.subr.mxu0 0.0
    %514 = vmatpush1.xpose.msra.mxu0 0.0
    %515 = vmatprep.subr.mxu0 0.0
    %516 = vmatpush1.xpose.msra.mxu0 0.0
    %517 = vmatprep.subr.mxu0 0.0
    %518 = vmatpush1.xpose.msra.mxu0 0.0
    %519 = vmatprep.subr.mxu0 0.0
    %520 = vmatpush1.xpose.msra.mxu0 0.0
    %521 = vmatprep.subr.mxu0 0.0
    %522 = vmatpush1.xpose.msra.mxu0 0.0
    %523 = vmatprep.subr.mxu0 0.0
    %524 = vmatpush1.xpose.msra.mxu0 0.0
    %525 = vmatprep.subr.mxu0 0.0
    %526 = vmatpush1.xpose.msra.mxu0 0.0
    %527 = vmatprep.subr.mxu0 0.0
    %528 = vmatpush1.xpose.msra.mxu0 0.0
    %529 = vmatprep.subr.mxu0 0.0
    %530 = vmatpush1.xpose.msra.mxu0 0.0
    %531 = vmatprep.subr.mxu0 0.0
    %532 = vmatpush1.xpose.msra.mxu0 0.0
    %533 = vmatprep.subr.mxu0 0.0
    %534 = vmatpush1.xpose.msra.mxu0 0.0
    %535 = vmatprep.mubr.f32.mxu0 0.0
    %536 = vmatmul.mubr.f32.gmra.mrb[0].mxu0 %v448
    %v537 = vpop.f32.mrb[0].mxu0
    %v538 = vadd.f32 0.0, %v537
    %v539 = vpop.f32.mrb[0].mxu0
    %540 = vmatprep.mubr.f32.mxu0 0.0
    %541 = vmatmul.mubr.f32.gmra.mrb[0].mxu0 %v451
    %v542 = vpop.f32.mrb[0].mxu0
    %v543 = vadd.f32 0.0, %v542
    %v544 = vpop.f32.mrb[0].mxu0
    %545 = vmatprep.mubr.f32.mxu0 0.0
    %546 = vmatmul.mubr.f32.gmra.mrb[0].mxu0 %v454
    %v547 = vpop.f32.mrb[0].mxu0
    %v548 = vadd.f32 0.0, %v547
    %v549 = vpop.f32.mrb[0].mxu0
    %550 = vmatprep.mubr.f32.mxu0 0.0
    %551 = vmatmul.mubr.f32.gmra.mrb[0].mxu0 %v457
    %v552 = vpop.f32.mrb[0].mxu0
    %v553 = vadd.f32 0.0, %v552
    %v554 = vpop.f32.mrb[0].mxu0
    %555 = vmatprep.mubr.f32.mxu0 0.0
    %556 = vmatmul.mubr.f32.gmra.mrb[0].mxu0 %v460
    %v557 = vpop.f32.mrb[0].mxu0
    %v558 = vadd.f32 0.0, %v557
    %v559 = vpop.f32.mrb[0].mxu0
    %560 = vmatprep.mubr.f32.mxu0 0.0
    %561 = vmatmul.mubr.f32.gmra.mrb[0].mxu0 %v463
    %v562 = vpop.f32.mrb[0].mxu0
    %v563 = vadd.f32 0.0, %v562
    %v564 = vpop.f32.mrb[0].mxu0
    %565 = vdwg.mxu0
    %s566 = scalar_lea.vmem %s0, 64
    %v567 = vld [vmem:[%s566] sm:$0xff]
    %v568 = vld [vmem:[%s566 + $0x8] sm:$0xff]
    %v569 = vld [vmem:[%s566 + $0x10] sm:$0xff]
    %v570 = vld [vmem:[%s566 + $0x18] sm:$0xff]
    %s571 = scalar_lea.vmem %s1, 64
    %v572 = vld [vmem:[%s571] sm:$0xff]
    %v573 = vld [vmem:[%s571 + $0x8] sm:$0xff]
    %v574 = vld [vmem:[%s571 + $0x10] sm:$0xff]
    %v575 = vld [vmem:[%s571 + $0x18] sm:$0xff]
    %s576 = scalar_lea.vmem %s2, 96
    %v577 = vld [vmem:[%s576] sm:$0xff]
    %v578 = vld [vmem:[%s576 + $0x8] sm:$0xff]
    %v579 = vld [vmem:[%s576 + $0x10] sm:$0xff]
    %v580 = vld [vmem:[%s576 + $0x18] sm:$0xff]
    %v581 = vld [vmem:[%s576 + $0x20] sm:$0xff]
    %v582 = vld [vmem:[%s576 + $0x28] sm:$0xff]
    %583 = vxpose.xlu0.b32.start [1/16] %v567, 128
    %584 = vxpose.xlu0.b32.cont [2/16] %v568, 128
    %585 = vxpose.xlu0.b32.cont [3/16] %v569, 128
    %586 = vxpose.xlu0.b32.cont [4/16] %v570, 128
    %587 = vxpose.xlu0.b32.cont [5/16] 0.0, 128
    %588 = vxpose.xlu0.b32.cont [6/16] 0.0, 128
    %589 = vxpose.xlu0.b32.cont [7/16] 0.0, 128
    %590 = vxpose.xlu0.b32.cont [8/16] 0.0, 128
    %591 = vxpose.xlu0.b32.cont [9/16] 0.0, 128
    %592 = vxpose.xlu0.b32.cont [10/16] 0.0, 128
    %593 = vxpose.xlu0.b32.cont [11/16] 0.0, 128
    %594 = vxpose.xlu0.b32.cont [12/16] 0.0, 128
    %595 = vxpose.xlu0.b32.cont [13/16] 0.0, 128
    %596 = vxpose.xlu0.b32.cont [14/16] 0.0, 128
    %597 = vxpose.xlu0.b32.cont [15/16] 0.0, 128
    %598 = vxpose.xlu0.b32.end [16/16] 0.0, 128
    %v599 = vpop.trf.xlu0
    %v600 = vpop.trf.xlu0
    %v601 = vpop.trf.xlu0
    %v602 = vpop.trf.xlu0
    %v603 = vpop.trf.xlu0
    %v604 = vpop.trf.xlu0
    %v605 = vpop.trf.xlu0
    %v606 = vpop.trf.xlu0
    %v607 = vpop.trf.xlu0
    %v608 = vpop.trf.xlu0
    %v609 = vpop.trf.xlu0
    %v610 = vpop.trf.xlu0
    %v611 = vpop.trf.xlu0
    %v612 = vpop.trf.xlu0
    %v613 = vpop.trf.xlu0
    %v614 = vpop.trf.xlu0
    %v616 = vsel %vm61, %v599, 0
    %v619 = vsel %vm61, %v600, 0
    %621 = vmatprep.subr.mxu0 0.0
    %622 = vmatpush1.msra.mxu0 %v572
    %623 = vmatprep.subr.mxu0 0.0
    %624 = vmatpush1.msra.mxu0 %v573
    %625 = vmatprep.subr.mxu0 0.0
    %626 = vmatpush1.msra.mxu0 %v574
    %627 = vmatprep.subr.mxu0 0.0
    %628 = vmatpush1.msra.mxu0 %v575
    %629 = vmatprep.subr.mxu0 0.0
    %630 = vmatpush1.msra.mxu0 0.0
    %631 = vmatprep.subr.mxu0 0.0
    %632 = vmatpush1.msra.mxu0 0.0
    %633 = vmatprep.subr.mxu0 0.0
    %634 = vmatpush1.msra.mxu0 0.0
    %635 = vmatprep.subr.mxu0 0.0
    %636 = vmatpush1.msra.mxu0 0.0
    %637 = vmatprep.subr.mxu0 0.0
    %638 = vmatpush1.msra.mxu0 0.0
    %639 = vmatprep.subr.mxu0 0.0
    %640 = vmatpush1.msra.mxu0 0.0
    %641 = vmatprep.subr.mxu0 0.0
    %642 = vmatpush1.msra.mxu0 0.0
    %643 = vmatprep.subr.mxu0 0.0
    %644 = vmatpush1.msra.mxu0 0.0
    %645 = vmatprep.subr.mxu0 0.0
    %646 = vmatpush1.msra.mxu0 0.0
    %647 = vmatprep.subr.mxu0 0.0
    %648 = vmatpush1.msra.mxu0 0.0
    %649 = vmatprep.subr.mxu0 0.0
    %650 = vmatpush1.msra.mxu0 0.0
    %651 = vmatprep.subr.mxu0 0.0
    %652 = vmatpush1.msra.mxu0 0.0
    %653 = vmatprep.subr.mxu0 0.0
    %654 = vmatpush1.msra.mxu0 0.0
    %655 = vmatprep.subr.mxu0 0.0
    %656 = vmatpush1.msra.mxu0 0.0
    %657 = vmatprep.subr.mxu0 0.0
    %658 = vmatpush1.msra.mxu0 0.0
    %659 = vmatprep.subr.mxu0 0.0
    %660 = vmatpush1.msra.mxu0 0.0
    %661 = vmatprep.subr.mxu0 0.0
    %662 = vmatpush1.msra.mxu0 0.0
    %663 = vmatprep.subr.mxu0 0.0
    %664 = vmatpush1.msra.mxu0 0.0
    %665 = vmatprep.subr.mxu0 0.0
    %666 = vmatpush1.msra.mxu0 0.0
    %667 = vmatprep.subr.mxu0 0.0
    %668 = vmatpush1.msra.mxu0 0.0
    %669 = vmatprep.subr.mxu0 0.0
    %670 = vmatpush1.msra.mxu0 0.0
    %671 = vmatprep.subr.mxu0 0.0
    %672 = vmatpush1.msra.mxu0 0.0
    %673 = vmatprep.subr.mxu0 0.0
    %674 = vmatpush1.msra.mxu0 0.0
    %675 = vmatprep.subr.mxu0 0.0
    %676 = vmatpush1.msra.mxu0 0.0
    %677 = vmatprep.subr.mxu0 0.0
    %678 = vmatpush1.msra.mxu0 0.0
    %679 = vmatprep.subr.mxu0 0.0
    %680 = vmatpush1.msra.mxu0 0.0
    %681 = vmatprep.subr.mxu0 0.0
    %682 = vmatpush1.msra.mxu0 0.0
    %683 = vmatprep.subr.mxu0 0.0
    %684 = vmatpush1.msra.mxu0 0.0
    %685 = vmatprep.mubr.f32.mxu0 0.0
    %686 = vmatmul.mubr.f32.gmra.mrb[0].mxu0 %v616
    %v687 = vpop.f32.mrb[0].mxu0
    %v688 = vadd.f32 0.0, %v687
    %v689 = vpop.f32.mrb[0].mxu0
    %690 = vmatprep.mubr.f32.mxu0 0.0
    %691 = vmatmul.mubr.f32.gmra.mrb[0].mxu0 %v619
    %v692 = vpop.f32.mrb[0].mxu0
    %v693 = vadd.f32 0.0, %v692
    %v694 = vpop.f32.mrb[0].mxu0
    %695 = vdwg.mxu0
    %v696 = vsel %vm143, %v688, -inf
    %v697 = vsel %vm143, %v693, -inf
    %v698 = vmax.f32 %v696, %v697
    %v699 = vrot.slane %v698, 4
    %v700 = vmax.f32 %v698, %v699
    %v701 = vrot.slane %v700, 2
    %v702 = vmax.f32 %v700, %v701
    %v703 = vrot.slane %v702, 1
    %v704 = vmax.f32 %v702, %v703
    %v705 = vsub.f32 %v688, %v704
    %v706 = vsub.f32 %v693, %v704
    %v707 = vmul.f32 %v705, 1.442695
    %v708 = vpow.pop %v707
    %v709 = vmul.f32 %v706, 1.442695
    %v710 = vpow.pop %v709
    %v711 = vsel %vm143, %v708, 0.0
    %v712 = vsel %vm143, %v710, 0.0
    %v713 = vadd.f32 %v711, %v712
    %v714 = vrot.slane %v713, 4
    %v715 = vadd.f32 %v713, %v714
    %v716 = vrot.slane %v715, 2
    %v717 = vadd.f32 %v715, %v716
    %v718 = vrot.slane %v717, 1
    %v719 = vadd.f32 %v717, %v718
    %v720 = vrcp.pop %v719
    %v721 = vmul.f32 %v708, %v720
    %v722 = vmul.f32 %v710, %v720
    %v724 = vsel %vm143, %v577, 0
    %v727 = vsel %vm143, %v578, 0
    %v730 = vsel %vm143, %v579, 0
    %v733 = vsel %vm143, %v580, 0
    %v736 = vsel %vm143, %v581, 0
    %v739 = vsel %vm143, %v582, 0
    %v742 = vsel %vm143, %v721, 0
    %v745 = vsel %vm143, %v722, 0
    %747 = vmatprep.subr.mxu0 0.0
    %748 = vmatpush1.xpose.msra.mxu0 %v742
    %749 = vmatprep.subr.mxu0 0.0
    %750 = vmatpush1.xpose.msra.mxu0 %v745
    %751 = vmatprep.subr.mxu0 0.0
    %752 = vmatpush1.xpose.msra.mxu0 0.0
    %753 = vmatprep.subr.mxu0 0.0
    %754 = vmatpush1.xpose.msra.mxu0 0.0
    %755 = vmatprep.subr.mxu0 0.0
    %756 = vmatpush1.xpose.msra.mxu0 0.0
    %757 = vmatprep.subr.mxu0 0.0
    %758 = vmatpush1.xpose.msra.mxu0 0.0
    %759 = vmatprep.subr.mxu0 0.0
    %760 = vmatpush1.xpose.msra.mxu0 0.0
    %761 = vmatprep.subr.mxu0 0.0
    %762 = vmatpush1.xpose.msra.mxu0 0.0
    %763 = vmatprep.subr.mxu0 0.0
    %764 = vmatpush1.xpose.msra.mxu0 0.0
    %765 = vmatprep.subr.mxu0 0.0
    %766 = vmatpush1.xpose.msra.mxu0 0.0
    %767 = vmatprep.subr.mxu0 0.0
    %768 = vmatpush1.xpose.msra.mxu0 0.0
    %769 = vmatprep.subr.mxu0 0.0
    %770 = vmatpush1.xpose.msra.mxu0 0.0
    %771 = vmatprep.subr.mxu0 0.0
    %772 = vmatpush1.xpose.msra.mxu0 0.0
    %773 = vmatprep.subr.mxu0 0.0
    %774 = vmatpush1.xpose.msra.mxu0 0.0
    %775 = vmatprep.subr.mxu0 0.0
    %776 = vmatpush1.xpose.msra.mxu0 0.0
    %777 = vmatprep.subr.mxu0 0.0
    %778 = vmatpush1.xpose.msra.mxu0 0.0
    %779 = vmatprep.subr.mxu0 0.0
    %780 = vmatpush1.xpose.msra.mxu0 0.0
    %781 = vmatprep.subr.mxu0 0.0
    %782 = vmatpush1.xpose.msra.mxu0 0.0
    %783 = vmatprep.subr.mxu0 0.0
    %784 = vmatpush1.xpose.msra.mxu0 0.0
    %785 = vmatprep.subr.mxu0 0.0
    %786 = vmatpush1.xpose.msra.mxu0 0.0
    %787 = vmatprep.subr.mxu0 0.0
    %788 = vmatpush1.xpose.msra.mxu0 0.0
    %789 = vmatprep.subr.mxu0 0.0
    %790 = vmatpush1.xpose.msra.mxu0 0.0
    %791 = vmatprep.subr.mxu0 0.0
    %792 = vmatpush1.xpose.msra.mxu0 0.0
    %793 = vmatprep.subr.mxu0 0.0
    %794 = vmatpush1.xpose.msra.mxu0 0.0
    %795 = vmatprep.subr.mxu0 0.0
    %796 = vmatpush1.xpose.msra.mxu0 0.0
    %797 = vmatprep.subr.mxu0 0.0
    %798 = vmatpush1.xpose.msra.mxu0 0.0
    %799 = vmatprep.subr.mxu0 0.0
    %800 = vmatpush1.xpose.msra.mxu0 0.0
    %801 = vmatprep.subr.mxu0 0.0
    %802 = vmatpush1.xpose.msra.mxu0 0.0
    %803 = vmatprep.subr.mxu0 0.0
    %804 = vmatpush1.xpose.msra.mxu0 0.0
    %805 = vmatprep.subr.mxu0 0.0
    %806 = vmatpush1.xpose.msra.mxu0 0.0
    %807 = vmatprep.subr.mxu0 0.0
    %808 = vmatpush1.xpose.msra.mxu0 0.0
    %809 = vmatprep.subr.mxu0 0.0
    %810 = vmatpush1.xpose.msra.mxu0 0.0
    %811 = vmatprep.mubr.f32.mxu0 0.0
    %812 = vmatmul.mubr.f32.gmra.mrb[0].mxu0 %v724
    %v813 = vpop.f32.mrb[0].mxu0
    %v814 = vadd.f32 0.0, %v813
    %v815 = vpop.f32.mrb[0].mxu0
    %816 = vmatprep.mubr.f32.mxu0 0.0
    %817 = vmatmul.mubr.f32.gmra.mrb[0].mxu0 %v727
    %v818 = vpop.f32.mrb[0].mxu0
    %v819 = vadd.f32 0.0, %v818
    %v820 = vpop.f32.mrb[0].mxu0
    %821 = vmatprep.mubr.f32.mxu0 0.0
    %822 = vmatmul.mubr.f32.gmra.mrb[0].mxu0 %v730
    %v823 = vpop.f32.mrb[0].mxu0
    %v824 = vadd.f32 0.0, %v823
    %v825 = vpop.f32.mrb[0].mxu0
    %826 = vmatprep.mubr.f32.mxu0 0.0
    %827 = vmatmul.mubr.f32.gmra.mrb[0].mxu0 %v733
    %v828 = vpop.f32.mrb[0].mxu0
    %v829 = vadd.f32 0.0, %v828
    %v830 = vpop.f32.mrb[0].mxu0
    %831 = vmatprep.mubr.f32.mxu0 0.0
    %832 = vmatmul.mubr.f32.gmra.mrb[0].mxu0 %v736
    %v833 = vpop.f32.mrb[0].mxu0
    %v834 = vadd.f32 0.0, %v833
    %v835 = vpop.f32.mrb[0].mxu0
    %836 = vmatprep.mubr.f32.mxu0 0.0
    %837 = vmatmul.mubr.f32.gmra.mrb[0].mxu0 %v739
    %v838 = vpop.f32.mrb[0].mxu0
    %v839 = vadd.f32 0.0, %v838
    %v840 = vpop.f32.mrb[0].mxu0
    %841 = vdwg.mxu0
    %s842 = scalar_lea.vmem %s0, 96
    %v843 = vld [vmem:[%s842] sm:$0xff]
    %v844 = vld [vmem:[%s842 + $0x8] sm:$0xff]
    %v845 = vld [vmem:[%s842 + $0x10] sm:$0xff]
    %v846 = vld [vmem:[%s842 + $0x18] sm:$0xff]
    %s847 = scalar_lea.vmem %s1, 96
    %v848 = vld [vmem:[%s847] sm:$0xff]
    %v849 = vld [vmem:[%s847 + $0x8] sm:$0xff]
    %v850 = vld [vmem:[%s847 + $0x10] sm:$0xff]
    %v851 = vld [vmem:[%s847 + $0x18] sm:$0xff]
    %s852 = scalar_lea.vmem %s2, 144
    %v853 = vld [vmem:[%s852] sm:$0xff]
    %v854 = vld [vmem:[%s852 + $0x8] sm:$0xff]
    %v855 = vld [vmem:[%s852 + $0x10] sm:$0xff]
    %v856 = vld [vmem:[%s852 + $0x18] sm:$0xff]
    %v857 = vld [vmem:[%s852 + $0x20] sm:$0xff]
    %v858 = vld [vmem:[%s852 + $0x28] sm:$0xff]
    %859 = vxpose.xlu0.b32.start [1/16] %v843, 128
    %860 = vxpose.xlu0.b32.cont [2/16] %v844, 128
    %861 = vxpose.xlu0.b32.cont [3/16] %v845, 128
    %862 = vxpose.xlu0.b32.cont [4/16] %v846, 128
    %863 = vxpose.xlu0.b32.cont [5/16] 0.0, 128
    %864 = vxpose.xlu0.b32.cont [6/16] 0.0, 128
    %865 = vxpose.xlu0.b32.cont [7/16] 0.0, 128
    %866 = vxpose.xlu0.b32.cont [8/16] 0.0, 128
    %867 = vxpose.xlu0.b32.cont [9/16] 0.0, 128
    %868 = vxpose.xlu0.b32.cont [10/16] 0.0, 128
    %869 = vxpose.xlu0.b32.cont [11/16] 0.0, 128
    %870 = vxpose.xlu0.b32.cont [12/16] 0.0, 128
    %871 = vxpose.xlu0.b32.cont [13/16] 0.0, 128
    %872 = vxpose.xlu0.b32.cont [14/16] 0.0, 128
    %873 = vxpose.xlu0.b32.cont [15/16] 0.0, 128
    %874 = vxpose.xlu0.b32.end [16/16] 0.0, 128
    %v875 = vpop.trf.xlu0
    %v876 = vpop.trf.xlu0
    %v877 = vpop.trf.xlu0
    %v878 = vpop.trf.xlu0
    %v879 = vpop.trf.xlu0
    %v880 = vpop.trf.xlu0
    %v881 = vpop.trf.xlu0
    %v882 = vpop.trf.xlu0
    %v883 = vpop.trf.xlu0
    %v884 = vpop.trf.xlu0
    %v885 = vpop.trf.xlu0
    %v886 = vpop.trf.xlu0
    %v887 = vpop.trf.xlu0
    %v888 = vpop.trf.xlu0
    %v889 = vpop.trf.xlu0
    %v890 = vpop.trf.xlu0
    %v892 = vsel %vm61, %v875, 0
    %v895 = vsel %vm61, %v876, 0
    %897 = vmatprep.subr.mxu0 0.0
    %898 = vmatpush1.msra.mxu0 %v848
    %899 = vmatprep.subr.mxu0 0.0
    %900 = vmatpush1.msra.mxu0 %v849
    %901 = vmatprep.subr.mxu0 0.0
    %902 = vmatpush1.msra.mxu0 %v850
    %903 = vmatprep.subr.mxu0 0.0
    %904 = vmatpush1.msra.mxu0 %v851
    %905 = vmatprep.subr.mxu0 0.0
    %906 = vmatpush1.msra.mxu0 0.0
    %907 = vmatprep.subr.mxu0 0.0
    %908 = vmatpush1.msra.mxu0 0.0
    %909 = vmatprep.subr.mxu0 0.0
    %910 = vmatpush1.msra.mxu0 0.0
    %911 = vmatprep.subr.mxu0 0.0
    %912 = vmatpush1.msra.mxu0 0.0
    %913 = vmatprep.subr.mxu0 0.0
    %914 = vmatpush1.msra.mxu0 0.0
    %915 = vmatprep.subr.mxu0 0.0
    %916 = vmatpush1.msra.mxu0 0.0
    %917 = vmatprep.subr.mxu0 0.0
    %918 = vmatpush1.msra.mxu0 0.0
    %919 = vmatprep.subr.mxu0 0.0
    %920 = vmatpush1.msra.mxu0 0.0
    %921 = vmatprep.subr.mxu0 0.0
    %922 = vmatpush1.msra.mxu0 0.0
    %923 = vmatprep.subr.mxu0 0.0
    %924 = vmatpush1.msra.mxu0 0.0
    %925 = vmatprep.subr.mxu0 0.0
    %926 = vmatpush1.msra.mxu0 0.0
    %927 = vmatprep.subr.mxu0 0.0
    %928 = vmatpush1.msra.mxu0 0.0
    %929 = vmatprep.subr.mxu0 0.0
    %930 = vmatpush1.msra.mxu0 0.0
    %931 = vmatprep.subr.mxu0 0.0
    %932 = vmatpush1.msra.mxu0 0.0
    %933 = vmatprep.subr.mxu0 0.0
    %934 = vmatpush1.msra.mxu0 0.0
    %935 = vmatprep.subr.mxu0 0.0
    %936 = vmatpush1.msra.mxu0 0.0
    %937 = vmatprep.subr.mxu0 0.0
    %938 = vmatpush1.msra.mxu0 0.0
    %939 = vmatprep.subr.mxu0 0.0
    %940 = vmatpush1.msra.mxu0 0.0
    %941 = vmatprep.subr.mxu0 0.0
    %942 = vmatpush1.msra.mxu0 0.0
    %943 = vmatprep.subr.mxu0 0.0
    %944 = vmatpush1.msra.mxu0 0.0
    %945 = vmatprep.subr.mxu0 0.0
    %946 = vmatpush1.msra.mxu0 0.0
    %947 = vmatprep.subr.mxu0 0.0
    %948 = vmatpush1.msra.mxu0 0.0
    %949 = vmatprep.subr.mxu0 0.0
    %950 = vmatpush1.msra.mxu0 0.0
    %951 = vmatprep.subr.mxu0 0.0
    %952 = vmatpush1.msra.mxu0 0.0
    %953 = vmatprep.subr.mxu0 0.0
    %954 = vmatpush1.msra.mxu0 0.0
    %955 = vmatprep.subr.mxu0 0.0
    %956 = vmatpush1.msra.mxu0 0.0
    %957 = vmatprep.subr.mxu0 0.0
    %958 = vmatpush1.msra.mxu0 0.0
    %959 = vmatprep.subr.mxu0 0.0
    %960 = vmatpush1.msra.mxu0 0.0
    %961 = vmatprep.mubr.f32.mxu0 0.0
    %962 = vmatmul.mubr.f32.gmra.mrb[0].mxu0 %v892
    %v963 = vpop.f32.mrb[0].mxu0
    %v964 = vadd.f32 0.0, %v963
    %v965 = vpop.f32.mrb[0].mxu0
    %966 = vmatprep.mubr.f32.mxu0 0.0
    %967 = vmatmul.mubr.f32.gmra.mrb[0].mxu0 %v895
    %v968 = vpop.f32.mrb[0].mxu0
    %v969 = vadd.f32 0.0, %v968
    %v970 = vpop.f32.mrb[0].mxu0
    %971 = vdwg.mxu0
    %v972 = vsel %vm143, %v964, -inf
    %v973 = vsel %vm143, %v969, -inf
    %v974 = vmax.f32 %v972, %v973
    %v975 = vrot.slane %v974, 4
    %v976 = vmax.f32 %v974, %v975
    %v977 = vrot.slane %v976, 2
    %v978 = vmax.f32 %v976, %v977
    %v979 = vrot.slane %v978, 1
    %v980 = vmax.f32 %v978, %v979
    %v981 = vsub.f32 %v964, %v980
    %v982 = vsub.f32 %v969, %v980
    %v983 = vmul.f32 %v981, 1.442695
    %v984 = vpow.pop %v983
    %v985 = vmul.f32 %v982, 1.442695
    %v986 = vpow.pop %v985
    %v987 = vsel %vm143, %v984, 0.0
    %v988 = vsel %vm143, %v986, 0.0
    %v989 = vadd.f32 %v987, %v988
    %v990 = vrot.slane %v989, 4
    %v991 = vadd.f32 %v989, %v990
    %v992 = vrot.slane %v991, 2
    %v993 = vadd.f32 %v991, %v992
    %v994 = vrot.slane %v993, 1
    %v995 = vadd.f32 %v993, %v994
    %v996 = vrcp.pop %v995
    %v997 = vmul.f32 %v984, %v996
    %v998 = vmul.f32 %v986, %v996
    %v1000 = vsel %vm143, %v853, 0
    %v1003 = vsel %vm143, %v854, 0
    %v1006 = vsel %vm143, %v855, 0
    %v1009 = vsel %vm143, %v856, 0
    %v1012 = vsel %vm143, %v857, 0
    %v1015 = vsel %vm143, %v858, 0
    %v1018 = vsel %vm143, %v997, 0
    %v1021 = vsel %vm143, %v998, 0
    %1023 = vmatprep.subr.mxu0 0.0
    %1024 = vmatpush1.xpose.msra.mxu0 %v1018
    %1025 = vmatprep.subr.mxu0 0.0
    %1026 = vmatpush1.xpose.msra.mxu0 %v1021
    %1027 = vmatprep.subr.mxu0 0.0
    %1028 = vmatpush1.xpose.msra.mxu0 0.0
    %1029 = vmatprep.subr.mxu0 0.0
    %1030 = vmatpush1.xpose.msra.mxu0 0.0
    %1031 = vmatprep.subr.mxu0 0.0
    %1032 = vmatpush1.xpose.msra.mxu0 0.0
    %1033 = vmatprep.subr.mxu0 0.0
    %1034 = vmatpush1.xpose.msra.mxu0 0.0
    %1035 = vmatprep.subr.mxu0 0.0
    %1036 = vmatpush1.xpose.msra.mxu0 0.0
    %1037 = vmatprep.subr.mxu0 0.0
    %1038 = vmatpush1.xpose.msra.mxu0 0.0
    %1039 = vmatprep.subr.mxu0 0.0
    %1040 = vmatpush1.xpose.msra.mxu0 0.0
    %1041 = vmatprep.subr.mxu0 0.0
    %1042 = vmatpush1.xpose.msra.mxu0 0.0
    %1043 = vmatprep.subr.mxu0 0.0
    %1044 = vmatpush1.xpose.msra.mxu0 0.0
    %1045 = vmatprep.subr.mxu0 0.0
    %1046 = vmatpush1.xpose.msra.mxu0 0.0
    %1047 = vmatprep.subr.mxu0 0.0
    %1048 = vmatpush1.xpose.msra.mxu0 0.0
    %1049 = vmatprep.subr.mxu0 0.0
    %1050 = vmatpush1.xpose.msra.mxu0 0.0
    %1051 = vmatprep.subr.mxu0 0.0
    %1052 = vmatpush1.xpose.msra.mxu0 0.0
    %1053 = vmatprep.subr.mxu0 0.0
    %1054 = vmatpush1.xpose.msra.mxu0 0.0
    %1055 = vmatprep.subr.mxu0 0.0
    %1056 = vmatpush1.xpose.msra.mxu0 0.0
    %1057 = vmatprep.subr.mxu0 0.0
    %1058 = vmatpush1.xpose.msra.mxu0 0.0
    %1059 = vmatprep.subr.mxu0 0.0
    %1060 = vmatpush1.xpose.msra.mxu0 0.0
    %1061 = vmatprep.subr.mxu0 0.0
    %1062 = vmatpush1.xpose.msra.mxu0 0.0
    %1063 = vmatprep.subr.mxu0 0.0
    %1064 = vmatpush1.xpose.msra.mxu0 0.0
    %1065 = vmatprep.subr.mxu0 0.0
    %1066 = vmatpush1.xpose.msra.mxu0 0.0
    %1067 = vmatprep.subr.mxu0 0.0
    %1068 = vmatpush1.xpose.msra.mxu0 0.0
    %1069 = vmatprep.subr.mxu0 0.0
    %1070 = vmatpush1.xpose.msra.mxu0 0.0
    %1071 = vmatprep.subr.mxu0 0.0
    %1072 = vmatpush1.xpose.msra.mxu0 0.0
    %1073 = vmatprep.subr.mxu0 0.0
    %1074 = vmatpush1.xpose.msra.mxu0 0.0
    %1075 = vmatprep.subr.mxu0 0.0
    %1076 = vmatpush1.xpose.msra.mxu0 0.0
    %1077 = vmatprep.subr.mxu0 0.0
    %1078 = vmatpush1.xpose.msra.mxu0 0.0
    %1079 = vmatprep.subr.mxu0 0.0
    %1080 = vmatpush1.xpose.msra.mxu0 0.0
    %1081 = vmatprep.subr.mxu0 0.0
    %1082 = vmatpush1.xpose.msra.mxu0 0.0
    %1083 = vmatprep.subr.mxu0 0.0
    %1084 = vmatpush1.xpose.msra.mxu0 0.0
    %1085 = vmatprep.subr.mxu0 0.0
    %1086 = vmatpush1.xpose.msra.mxu0 0.0
    %1087 = vmatprep.mubr.f32.mxu0 0.0
    %1088 = vmatmul.mubr.f32.gmra.mrb[0].mxu0 %v1000
    %v1089 = vpop.f32.mrb[0].mxu0
    %v1090 = vadd.f32 0.0, %v1089
    %v1091 = vpop.f32.mrb[0].mxu0
    %1092 = vmatprep.mubr.f32.mxu0 0.0
    %1093 = vmatmul.mubr.f32.gmra.mrb[0].mxu0 %v1003
    %v1094 = vpop.f32.mrb[0].mxu0
    %v1095 = vadd.f32 0.0, %v1094
    %v1096 = vpop.f32.mrb[0].mxu0
    %1097 = vmatprep.mubr.f32.mxu0 0.0
    %1098 = vmatmul.mubr.f32.gmra.mrb[0].mxu0 %v1006
    %v1099 = vpop.f32.mrb[0].mxu0
    %v1100 = vadd.f32 0.0, %v1099
    %v1101 = vpop.f32.mrb[0].mxu0
    %1102 = vmatprep.mubr.f32.mxu0 0.0
    %1103 = vmatmul.mubr.f32.gmra.mrb[0].mxu0 %v1009
    %v1104 = vpop.f32.mrb[0].mxu0
    %v1105 = vadd.f32 0.0, %v1104
    %v1106 = vpop.f32.mrb[0].mxu0
    %1107 = vmatprep.mubr.f32.mxu0 0.0
    %1108 = vmatmul.mubr.f32.gmra.mrb[0].mxu0 %v1012
    %v1109 = vpop.f32.mrb[0].mxu0
    %v1110 = vadd.f32 0.0, %v1109
    %v1111 = vpop.f32.mrb[0].mxu0
    %1112 = vmatprep.mubr.f32.mxu0 0.0
    %1113 = vmatmul.mubr.f32.gmra.mrb[0].mxu0 %v1015
    %v1114 = vpop.f32.mrb[0].mxu0
    %v1115 = vadd.f32 0.0, %v1114
    %v1116 = vpop.f32.mrb[0].mxu0
    %1117 = vdwg.mxu0
    %s1118 = scalar_lea.vmem %s0, 128
    %v1119 = vld [vmem:[%s1118] sm:$0xff]
    %v1120 = vld [vmem:[%s1118 + $0x8] sm:$0xff]
    %v1121 = vld [vmem:[%s1118 + $0x10] sm:$0xff]
    %v1122 = vld [vmem:[%s1118 + $0x18] sm:$0xff]
    %s1123 = scalar_lea.vmem %s1, 128
    %v1124 = vld [vmem:[%s1123] sm:$0xff]
    %v1125 = vld [vmem:[%s1123 + $0x8] sm:$0xff]
    %v1126 = vld [vmem:[%s1123 + $0x10] sm:$0xff]
    %v1127 = vld [vmem:[%s1123 + $0x18] sm:$0xff]
    %s1128 = scalar_lea.vmem %s2, 192
    %v1129 = vld [vmem:[%s1128] sm:$0xff]
    %v1130 = vld [vmem:[%s1128 + $0x8] sm:$0xff]
    %v1131 = vld [vmem:[%s1128 + $0x10] sm:$0xff]
    %v1132 = vld [vmem:[%s1128 + $0x18] sm:$0xff]
    %v1133 = vld [vmem:[%s1128 + $0x20] sm:$0xff]
    %v1134 = vld [vmem:[%s1128 + $0x28] sm:$0xff]
    %1135 = vxpose.xlu0.b32.start [1/16] %v1119, 128
    %1136 = vxpose.xlu0.b32.cont [2/16] %v1120, 128
    %1137 = vxpose.xlu0.b32.cont [3/16] %v1121, 128
    %1138 = vxpose.xlu0.b32.cont [4/16] %v1122, 128
    %1139 = vxpose.xlu0.b32.cont [5/16] 0.0, 128
    %1140 = vxpose.xlu0.b32.cont [6/16] 0.0, 128
    %1141 = vxpose.xlu0.b32.cont [7/16] 0.0, 128
    %1142 = vxpose.xlu0.b32.cont [8/16] 0.0, 128
    %1143 = vxpose.xlu0.b32.cont [9/16] 0.0, 128
    %1144 = vxpose.xlu0.b32.cont [10/16] 0.0, 128
    %1145 = vxpose.xlu0.b32.cont [11/16] 0.0, 128
    %1146 = vxpose.xlu0.b32.cont [12/16] 0.0, 128
    %1147 = vxpose.xlu0.b32.cont [13/16] 0.0, 128
    %1148 = vxpose.xlu0.b32.cont [14/16] 0.0, 128
    %1149 = vxpose.xlu0.b32.cont [15/16] 0.0, 128
    %1150 = vxpose.xlu0.b32.end [16/16] 0.0, 128
    %v1151 = vpop.trf.xlu0
    %v1152 = vpop.trf.xlu0
    %v1153 = vpop.trf.xlu0
    %v1154 = vpop.trf.xlu0
    %v1155 = vpop.trf.xlu0
    %v1156 = vpop.trf.xlu0
    %v1157 = vpop.trf.xlu0
    %v1158 = vpop.trf.xlu0
    %v1159 = vpop.trf.xlu0
    %v1160 = vpop.trf.xlu0
    %v1161 = vpop.trf.xlu0
    %v1162 = vpop.trf.xlu0
    %v1163 = vpop.trf.xlu0
    %v1164 = vpop.trf.xlu0
    %v1165 = vpop.trf.xlu0
    %v1166 = vpop.trf.xlu0
    %v1168 = vsel %vm61, %v1151, 0
    %v1171 = vsel %vm61, %v1152, 0
    %1173 = vmatprep.subr.mxu0 0.0
    %1174 = vmatpush1.msra.mxu0 %v1124
    %1175 = vmatprep.subr.mxu0 0.0
    %1176 = vmatpush1.msra.mxu0 %v1125
    %1177 = vmatprep.subr.mxu0 0.0
    %1178 = vmatpush1.msra.mxu0 %v1126
    %1179 = vmatprep.subr.mxu0 0.0
    %1180 = vmatpush1.msra.mxu0 %v1127
    %1181 = vmatprep.subr.mxu0 0.0
    %1182 = vmatpush1.msra.mxu0 0.0
    %1183 = vmatprep.subr.mxu0 0.0
    %1184 = vmatpush1.msra.mxu0 0.0
    %1185 = vmatprep.subr.mxu0 0.0
    %1186 = vmatpush1.msra.mxu0 0.0
    %1187 = vmatprep.subr.mxu0 0.0
    %1188 = vmatpush1.msra.mxu0 0.0
    %1189 = vmatprep.subr.mxu0 0.0
    %1190 = vmatpush1.msra.mxu0 0.0
    %1191 = vmatprep.subr.mxu0 0.0
    %1192 = vmatpush1.msra.mxu0 0.0
    %1193 = vmatprep.subr.mxu0 0.0
    %1194 = vmatpush1.msra.mxu0 0.0
    %1195 = vmatprep.subr.mxu0 0.0
    %1196 = vmatpush1.msra.mxu0 0.0
    %1197 = vmatprep.subr.mxu0 0.0
    %1198 = vmatpush1.msra.mxu0 0.0
    %1199 = vmatprep.subr.mxu0 0.0
    %1200 = vmatpush1.msra.mxu0 0.0
    %1201 = vmatprep.subr.mxu0 0.0
    %1202 = vmatpush1.msra.mxu0 0.0
    %1203 = vmatprep.subr.mxu0 0.0
    %1204 = vmatpush1.msra.mxu0 0.0
    %1205 = vmatprep.subr.mxu0 0.0
    %1206 = vmatpush1.msra.mxu0 0.0
    %1207 = vmatprep.subr.mxu0 0.0
    %1208 = vmatpush1.msra.mxu0 0.0
    %1209 = vmatprep.subr.mxu0 0.0
    %1210 = vmatpush1.msra.mxu0 0.0
    %1211 = vmatprep.subr.mxu0 0.0
    %1212 = vmatpush1.msra.mxu0 0.0
    %1213 = vmatprep.subr.mxu0 0.0
    %1214 = vmatpush1.msra.mxu0 0.0
    %1215 = vmatprep.subr.mxu0 0.0
    %1216 = vmatpush1.msra.mxu0 0.0
    %1217 = vmatprep.subr.mxu0 0.0
    %1218 = vmatpush1.msra.mxu0 0.0
    %1219 = vmatprep.subr.mxu0 0.0
    %1220 = vmatpush1.msra.mxu0 0.0
    %1221 = vmatprep.subr.mxu0 0.0
    %1222 = vmatpush1.msra.mxu0 0.0
    %1223 = vmatprep.subr.mxu0 0.0
    %1224 = vmatpush1.msra.mxu0 0.0
    %1225 = vmatprep.subr.mxu0 0.0
    %1226 = vmatpush1.msra.mxu0 0.0
    %1227 = vmatprep.subr.mxu0 0.0
    %1228 = vmatpush1.msra.mxu0 0.0
    %1229 = vmatprep.subr.mxu0 0.0
    %1230 = vmatpush1.msra.mxu0 0.0
    %1231 = vmatprep.subr.mxu0 0.0
    %1232 = vmatpush1.msra.mxu0 0.0
    %1233 = vmatprep.subr.mxu0 0.0
    %1234 = vmatpush1.msra.mxu0 0.0
    %1235 = vmatprep.subr.mxu0 0.0
    %1236 = vmatpush1.msra.mxu0 0.0
    %1237 = vmatprep.mubr.f32.mxu0 0.0
    %1238 = vmatmul.mubr.f32.gmra.mrb[0].mxu0 %v1168
    %v1239 = vpop.f32.mrb[0].mxu0
    %v1240 = vadd.f32 0.0, %v1239
    %v1241 = vpop.f32.mrb[0].mxu0
    %1242 = vmatprep.mubr.f32.mxu0 0.0
    %1243 = vmatmul.mubr.f32.gmra.mrb[0].mxu0 %v1171
    %v1244 = vpop.f32.mrb[0].mxu0
    %v1245 = vadd.f32 0.0, %v1244
    %v1246 = vpop.f32.mrb[0].mxu0
    %1247 = vdwg.mxu0
    %v1248 = vsel %vm143, %v1240, -inf
    %v1249 = vsel %vm143, %v1245, -inf
    %v1250 = vmax.f32 %v1248, %v1249
    %v1251 = vrot.slane %v1250, 4
    %v1252 = vmax.f32 %v1250, %v1251
    %v1253 = vrot.slane %v1252, 2
    %v1254 = vmax.f32 %v1252, %v1253
    %v1255 = vrot.slane %v1254, 1
    %v1256 = vmax.f32 %v1254, %v1255
    %v1257 = vsub.f32 %v1240, %v1256
    %v1258 = vsub.f32 %v1245, %v1256
    %v1259 = vmul.f32 %v1257, 1.442695
    %v1260 = vpow.pop %v1259
    %v1261 = vmul.f32 %v1258, 1.442695
    %v1262 = vpow.pop %v1261
    %v1263 = vsel %vm143, %v1260, 0.0
    %v1264 = vsel %vm143, %v1262, 0.0
    %v1265 = vadd.f32 %v1263, %v1264
    %v1266 = vrot.slane %v1265, 4
    %v1267 = vadd.f32 %v1265, %v1266
    %v1268 = vrot.slane %v1267, 2
    %v1269 = vadd.f32 %v1267, %v1268
    %v1270 = vrot.slane %v1269, 1
    %v1271 = vadd.f32 %v1269, %v1270
    %v1272 = vrcp.pop %v1271
    %v1273 = vmul.f32 %v1260, %v1272
    %v1274 = vmul.f32 %v1262, %v1272
    %v1276 = vsel %vm143, %v1129, 0
    %v1279 = vsel %vm143, %v1130, 0
    %v1282 = vsel %vm143, %v1131, 0
    %v1285 = vsel %vm143, %v1132, 0
    %v1288 = vsel %vm143, %v1133, 0
    %v1291 = vsel %vm143, %v1134, 0
    %v1294 = vsel %vm143, %v1273, 0
    %v1297 = vsel %vm143, %v1274, 0
    %1299 = vmatprep.subr.mxu0 0.0
    %1300 = vmatpush1.xpose.msra.mxu0 %v1294
    %1301 = vmatprep.subr.mxu0 0.0
    %1302 = vmatpush1.xpose.msra.mxu0 %v1297
    %1303 = vmatprep.subr.mxu0 0.0
    %1304 = vmatpush1.xpose.msra.mxu0 0.0
    %1305 = vmatprep.subr.mxu0 0.0
    %1306 = vmatpush1.xpose.msra.mxu0 0.0
    %1307 = vmatprep.subr.mxu0 0.0
    %1308 = vmatpush1.xpose.msra.mxu0 0.0
    %1309 = vmatprep.subr.mxu0 0.0
    %1310 = vmatpush1.xpose.msra.mxu0 0.0
    %1311 = vmatprep.subr.mxu0 0.0
    %1312 = vmatpush1.xpose.msra.mxu0 0.0
    %1313 = vmatprep.subr.mxu0 0.0
    %1314 = vmatpush1.xpose.msra.mxu0 0.0
    %1315 = vmatprep.subr.mxu0 0.0
    %1316 = vmatpush1.xpose.msra.mxu0 0.0
    %1317 = vmatprep.subr.mxu0 0.0
    %1318 = vmatpush1.xpose.msra.mxu0 0.0
    %1319 = vmatprep.subr.mxu0 0.0
    %1320 = vmatpush1.xpose.msra.mxu0 0.0
    %1321 = vmatprep.subr.mxu0 0.0
    %1322 = vmatpush1.xpose.msra.mxu0 0.0
    %1323 = vmatprep.subr.mxu0 0.0
    %1324 = vmatpush1.xpose.msra.mxu0 0.0
    %1325 = vmatprep.subr.mxu0 0.0
    %1326 = vmatpush1.xpose.msra.mxu0 0.0
    %1327 = vmatprep.subr.mxu0 0.0
    %1328 = vmatpush1.xpose.msra.mxu0 0.0
    %1329 = vmatprep.subr.mxu0 0.0
    %1330 = vmatpush1.xpose.msra.mxu0 0.0
    %1331 = vmatprep.subr.mxu0 0.0
    %1332 = vmatpush1.xpose.msra.mxu0 0.0
    %1333 = vmatprep.subr.mxu0 0.0
    %1334 = vmatpush1.xpose.msra.mxu0 0.0
    %1335 = vmatprep.subr.mxu0 0.0
    %1336 = vmatpush1.xpose.msra.mxu0 0.0
    %1337 = vmatprep.subr.mxu0 0.0
    %1338 = vmatpush1.xpose.msra.mxu0 0.0
    %1339 = vmatprep.subr.mxu0 0.0
    %1340 = vmatpush1.xpose.msra.mxu0 0.0
    %1341 = vmatprep.subr.mxu0 0.0
    %1342 = vmatpush1.xpose.msra.mxu0 0.0
    %1343 = vmatprep.subr.mxu0 0.0
    %1344 = vmatpush1.xpose.msra.mxu0 0.0
    %1345 = vmatprep.subr.mxu0 0.0
    %1346 = vmatpush1.xpose.msra.mxu0 0.0
    %1347 = vmatprep.subr.mxu0 0.0
    %1348 = vmatpush1.xpose.msra.mxu0 0.0
    %1349 = vmatprep.subr.mxu0 0.0
    %1350 = vmatpush1.xpose.msra.mxu0 0.0
    %1351 = vmatprep.subr.mxu0 0.0
    %1352 = vmatpush1.xpose.msra.mxu0 0.0
    %1353 = vmatprep.subr.mxu0 0.0
    %1354 = vmatpush1.xpose.msra.mxu0 0.0
    %1355 = vmatprep.subr.mxu0 0.0
    %1356 = vmatpush1.xpose.msra.mxu0 0.0
    %1357 = vmatprep.subr.mxu0 0.0
    %1358 = vmatpush1.xpose.msra.mxu0 0.0
    %1359 = vmatprep.subr.mxu0 0.0
    %1360 = vmatpush1.xpose.msra.mxu0 0.0
    %1361 = vmatprep.subr.mxu0 0.0
    %1362 = vmatpush1.xpose.msra.mxu0 0.0
    %1363 = vmatprep.mubr.f32.mxu0 0.0
    %1364 = vmatmul.mubr.f32.gmra.mrb[0].mxu0 %v1276
    %v1365 = vpop.f32.mrb[0].mxu0
    %v1366 = vadd.f32 0.0, %v1365
    %v1367 = vpop.f32.mrb[0].mxu0
    %1368 = vmatprep.mubr.f32.mxu0 0.0
    %1369 = vmatmul.mubr.f32.gmra.mrb[0].mxu0 %v1279
    %v1370 = vpop.f32.mrb[0].mxu0
    %v1371 = vadd.f32 0.0, %v1370
    %v1372 = vpop.f32.mrb[0].mxu0
    %1373 = vmatprep.mubr.f32.mxu0 0.0
    %1374 = vmatmul.mubr.f32.gmra.mrb[0].mxu0 %v1282
    %v1375 = vpop.f32.mrb[0].mxu0
    %v1376 = vadd.f32 0.0, %v1375
    %v1377 = vpop.f32.mrb[0].mxu0
    %1378 = vmatprep.mubr.f32.mxu0 0.0
    %1379 = vmatmul.mubr.f32.gmra.mrb[0].mxu0 %v1285
    %v1380 = vpop.f32.mrb[0].mxu0
    %v1381 = vadd.f32 0.0, %v1380
    %v1382 = vpop.f32.mrb[0].mxu0
    %1383 = vmatprep.mubr.f32.mxu0 0.0
    %1384 = vmatmul.mubr.f32.gmra.mrb[0].mxu0 %v1288
    %v1385 = vpop.f32.mrb[0].mxu0
    %v1386 = vadd.f32 0.0, %v1385
    %v1387 = vpop.f32.mrb[0].mxu0
    %1388 = vmatprep.mubr.f32.mxu0 0.0
    %1389 = vmatmul.mubr.f32.gmra.mrb[0].mxu0 %v1291
    %v1390 = vpop.f32.mrb[0].mxu0
    %v1391 = vadd.f32 0.0, %v1390
    %v1392 = vpop.f32.mrb[0].mxu0
    %1393 = vdwg.mxu0
    %s1394 = scalar_lea.vmem %s0, 160
    %v1395 = vld [vmem:[%s1394] sm:$0xff]
    %v1396 = vld [vmem:[%s1394 + $0x8] sm:$0xff]
    %v1397 = vld [vmem:[%s1394 + $0x10] sm:$0xff]
    %v1398 = vld [vmem:[%s1394 + $0x18] sm:$0xff]
    %s1399 = scalar_lea.vmem %s1, 160
    %v1400 = vld [vmem:[%s1399] sm:$0xff]
    %v1401 = vld [vmem:[%s1399 + $0x8] sm:$0xff]
    %v1402 = vld [vmem:[%s1399 + $0x10] sm:$0xff]
    %v1403 = vld [vmem:[%s1399 + $0x18] sm:$0xff]
    %s1404 = scalar_lea.vmem %s2, 240
    %v1405 = vld [vmem:[%s1404] sm:$0xff]
    %v1406 = vld [vmem:[%s1404 + $0x8] sm:$0xff]
    %v1407 = vld [vmem:[%s1404 + $0x10] sm:$0xff]
    %v1408 = vld [vmem:[%s1404 + $0x18] sm:$0xff]
    %v1409 = vld [vmem:[%s1404 + $0x20] sm:$0xff]
    %v1410 = vld [vmem:[%s1404 + $0x28] sm:$0xff]
    %1411 = vxpose.xlu0.b32.start [1/16] %v1395, 128
    %1412 = vxpose.xlu0.b32.cont [2/16] %v1396, 128
    %1413 = vxpose.xlu0.b32.cont [3/16] %v1397, 128
    %1414 = vxpose.xlu0.b32.cont [4/16] %v1398, 128
    %1415 = vxpose.xlu0.b32.cont [5/16] 0.0, 128
    %1416 = vxpose.xlu0.b32.cont [6/16] 0.0, 128
    %1417 = vxpose.xlu0.b32.cont [7/16] 0.0, 128
    %1418 = vxpose.xlu0.b32.cont [8/16] 0.0, 128
    %1419 = vxpose.xlu0.b32.cont [9/16] 0.0, 128
    %1420 = vxpose.xlu0.b32.cont [10/16] 0.0, 128
    %1421 = vxpose.xlu0.b32.cont [11/16] 0.0, 128
    %1422 = vxpose.xlu0.b32.cont [12/16] 0.0, 128
    %1423 = vxpose.xlu0.b32.cont [13/16] 0.0, 128
    %1424 = vxpose.xlu0.b32.cont [14/16] 0.0, 128
    %1425 = vxpose.xlu0.b32.cont [15/16] 0.0, 128
    %1426 = vxpose.xlu0.b32.end [16/16] 0.0, 128
    %v1427 = vpop.trf.xlu0
    %v1428 = vpop.trf.xlu0
    %v1429 = vpop.trf.xlu0
    %v1430 = vpop.trf.xlu0
    %v1431 = vpop.trf.xlu0
    %v1432 = vpop.trf.xlu0
    %v1433 = vpop.trf.xlu0
    %v1434 = vpop.trf.xlu0
    %v1435 = vpop.trf.xlu0
    %v1436 = vpop.trf.xlu0
    %v1437 = vpop.trf.xlu0
    %v1438 = vpop.trf.xlu0
    %v1439 = vpop.trf.xlu0
    %v1440 = vpop.trf.xlu0
    %v1441 = vpop.trf.xlu0
    %v1442 = vpop.trf.xlu0
    %v1444 = vsel %vm61, %v1427, 0
    %v1447 = vsel %vm61, %v1428, 0
    %1449 = vmatprep.subr.mxu0 0.0
    %1450 = vmatpush1.msra.mxu0 %v1400
    %1451 = vmatprep.subr.mxu0 0.0
    %1452 = vmatpush1.msra.mxu0 %v1401
    %1453 = vmatprep.subr.mxu0 0.0
    %1454 = vmatpush1.msra.mxu0 %v1402
    %1455 = vmatprep.subr.mxu0 0.0
    %1456 = vmatpush1.msra.mxu0 %v1403
    %1457 = vmatprep.subr.mxu0 0.0
    %1458 = vmatpush1.msra.mxu0 0.0
    %1459 = vmatprep.subr.mxu0 0.0
    %1460 = vmatpush1.msra.mxu0 0.0
    %1461 = vmatprep.subr.mxu0 0.0
    %1462 = vmatpush1.msra.mxu0 0.0
    %1463 = vmatprep.subr.mxu0 0.0
    %1464 = vmatpush1.msra.mxu0 0.0
    %1465 = vmatprep.subr.mxu0 0.0
    %1466 = vmatpush1.msra.mxu0 0.0
    %1467 = vmatprep.subr.mxu0 0.0
    %1468 = vmatpush1.msra.mxu0 0.0
    %1469 = vmatprep.subr.mxu0 0.0
    %1470 = vmatpush1.msra.mxu0 0.0
    %1471 = vmatprep.subr.mxu0 0.0
    %1472 = vmatpush1.msra.mxu0 0.0
    %1473 = vmatprep.subr.mxu0 0.0
    %1474 = vmatpush1.msra.mxu0 0.0
    %1475 = vmatprep.subr.mxu0 0.0
    %1476 = vmatpush1.msra.mxu0 0.0
    %1477 = vmatprep.subr.mxu0 0.0
    %1478 = vmatpush1.msra.mxu0 0.0
    %1479 = vmatprep.subr.mxu0 0.0
    %1480 = vmatpush1.msra.mxu0 0.0
    %1481 = vmatprep.subr.mxu0 0.0
    %1482 = vmatpush1.msra.mxu0 0.0
    %1483 = vmatprep.subr.mxu0 0.0
    %1484 = vmatpush1.msra.mxu0 0.0
    %1485 = vmatprep.subr.mxu0 0.0
    %1486 = vmatpush1.msra.mxu0 0.0
    %1487 = vmatprep.subr.mxu0 0.0
    %1488 = vmatpush1.msra.mxu0 0.0
    %1489 = vmatprep.subr.mxu0 0.0
    %1490 = vmatpush1.msra.mxu0 0.0
    %1491 = vmatprep.subr.mxu0 0.0
    %1492 = vmatpush1.msra.mxu0 0.0
    %1493 = vmatprep.subr.mxu0 0.0
    %1494 = vmatpush1.msra.mxu0 0.0
    %1495 = vmatprep.subr.mxu0 0.0
    %1496 = vmatpush1.msra.mxu0 0.0
    %1497 = vmatprep.subr.mxu0 0.0
    %1498 = vmatpush1.msra.mxu0 0.0
    %1499 = vmatprep.subr.mxu0 0.0
    %1500 = vmatpush1.msra.mxu0 0.0
    %1501 = vmatprep.subr.mxu0 0.0
    %1502 = vmatpush1.msra.mxu0 0.0
    %1503 = vmatprep.subr.mxu0 0.0
    %1504 = vmatpush1.msra.mxu0 0.0
    %1505 = vmatprep.subr.mxu0 0.0
    %1506 = vmatpush1.msra.mxu0 0.0
    %1507 = vmatprep.subr.mxu0 0.0
    %1508 = vmatpush1.msra.mxu0 0.0
    %1509 = vmatprep.subr.mxu0 0.0
    %1510 = vmatpush1.msra.mxu0 0.0
    %1511 = vmatprep.subr.mxu0 0.0
    %1512 = vmatpush1.msra.mxu0 0.0
    %1513 = vmatprep.mubr.f32.mxu0 0.0
    %1514 = vmatmul.mubr.f32.gmra.mrb[0].mxu0 %v1444
    %v1515 = vpop.f32.mrb[0].mxu0
    %v1516 = vadd.f32 0.0, %v1515
    %v1517 = vpop.f32.mrb[0].mxu0
    %1518 = vmatprep.mubr.f32.mxu0 0.0
    %1519 = vmatmul.mubr.f32.gmra.mrb[0].mxu0 %v1447
    %v1520 = vpop.f32.mrb[0].mxu0
    %v1521 = vadd.f32 0.0, %v1520
    %v1522 = vpop.f32.mrb[0].mxu0
    %1523 = vdwg.mxu0
    %v1524 = vsel %vm143, %v1516, -inf
    %v1525 = vsel %vm143, %v1521, -inf
    %v1526 = vmax.f32 %v1524, %v1525
    %v1527 = vrot.slane %v1526, 4
    %v1528 = vmax.f32 %v1526, %v1527
    %v1529 = vrot.slane %v1528, 2
    %v1530 = vmax.f32 %v1528, %v1529
    %v1531 = vrot.slane %v1530, 1
    %v1532 = vmax.f32 %v1530, %v1531
    %v1533 = vsub.f32 %v1516, %v1532
    %v1534 = vsub.f32 %v1521, %v1532
    %v1535 = vmul.f32 %v1533, 1.442695
    %v1536 = vpow.pop %v1535
    %v1537 = vmul.f32 %v1534, 1.442695
    %v1538 = vpow.pop %v1537
    %v1539 = vsel %vm143, %v1536, 0.0
    %v1540 = vsel %vm143, %v1538, 0.0
    %v1541 = vadd.f32 %v1539, %v1540
    %v1542 = vrot.slane %v1541, 4
    %v1543 = vadd.f32 %v1541, %v1542
    %v1544 = vrot.slane %v1543, 2
    %v1545 = vadd.f32 %v1543, %v1544
    %v1546 = vrot.slane %v1545, 1
    %v1547 = vadd.f32 %v1545, %v1546
    %v1548 = vrcp.pop %v1547
    %v1549 = vmul.f32 %v1536, %v1548
    %v1550 = vmul.f32 %v1538, %v1548
    %v1552 = vsel %vm143, %v1405, 0
    %v1555 = vsel %vm143, %v1406, 0
    %v1558 = vsel %vm143, %v1407, 0
    %v1561 = vsel %vm143, %v1408, 0
    %v1564 = vsel %vm143, %v1409, 0
    %v1567 = vsel %vm143, %v1410, 0
    %v1570 = vsel %vm143, %v1549, 0
    %v1573 = vsel %vm143, %v1550, 0
    %1575 = vmatprep.subr.mxu0 0.0
    %1576 = vmatpush1.xpose.msra.mxu0 %v1570
    %1577 = vmatprep.subr.mxu0 0.0
    %1578 = vmatpush1.xpose.msra.mxu0 %v1573
    %1579 = vmatprep.subr.mxu0 0.0
    %1580 = vmatpush1.xpose.msra.mxu0 0.0
    %1581 = vmatprep.subr.mxu0 0.0
    %1582 = vmatpush1.xpose.msra.mxu0 0.0
    %1583 = vmatprep.subr.mxu0 0.0
    %1584 = vmatpush1.xpose.msra.mxu0 0.0
    %1585 = vmatprep.subr.mxu0 0.0
    %1586 = vmatpush1.xpose.msra.mxu0 0.0
    %1587 = vmatprep.subr.mxu0 0.0
    %1588 = vmatpush1.xpose.msra.mxu0 0.0
    %1589 = vmatprep.subr.mxu0 0.0
    %1590 = vmatpush1.xpose.msra.mxu0 0.0
    %1591 = vmatprep.subr.mxu0 0.0
    %1592 = vmatpush1.xpose.msra.mxu0 0.0
    %1593 = vmatprep.subr.mxu0 0.0
    %1594 = vmatpush1.xpose.msra.mxu0 0.0
    %1595 = vmatprep.subr.mxu0 0.0
    %1596 = vmatpush1.xpose.msra.mxu0 0.0
    %1597 = vmatprep.subr.mxu0 0.0
    %1598 = vmatpush1.xpose.msra.mxu0 0.0
    %1599 = vmatprep.subr.mxu0 0.0
    %1600 = vmatpush1.xpose.msra.mxu0 0.0
    %1601 = vmatprep.subr.mxu0 0.0
    %1602 = vmatpush1.xpose.msra.mxu0 0.0
    %1603 = vmatprep.subr.mxu0 0.0
    %1604 = vmatpush1.xpose.msra.mxu0 0.0
    %1605 = vmatprep.subr.mxu0 0.0
    %1606 = vmatpush1.xpose.msra.mxu0 0.0
    %1607 = vmatprep.subr.mxu0 0.0
    %1608 = vmatpush1.xpose.msra.mxu0 0.0
    %1609 = vmatprep.subr.mxu0 0.0
    %1610 = vmatpush1.xpose.msra.mxu0 0.0
    %1611 = vmatprep.subr.mxu0 0.0
    %1612 = vmatpush1.xpose.msra.mxu0 0.0
    %1613 = vmatprep.subr.mxu0 0.0
    %1614 = vmatpush1.xpose.msra.mxu0 0.0
    %1615 = vmatprep.subr.mxu0 0.0
    %1616 = vmatpush1.xpose.msra.mxu0 0.0
    %1617 = vmatprep.subr.mxu0 0.0
    %1618 = vmatpush1.xpose.msra.mxu0 0.0
    %1619 = vmatprep.subr.mxu0 0.0
    %1620 = vmatpush1.xpose.msra.mxu0 0.0
    %1621 = vmatprep.subr.mxu0 0.0
    %1622 = vmatpush1.xpose.msra.mxu0 0.0
    %1623 = vmatprep.subr.mxu0 0.0
    %1624 = vmatpush1.xpose.msra.mxu0 0.0
    %1625 = vmatprep.subr.mxu0 0.0
    %1626 = vmatpush1.xpose.msra.mxu0 0.0
    %1627 = vmatprep.subr.mxu0 0.0
    %1628 = vmatpush1.xpose.msra.mxu0 0.0
    %1629 = vmatprep.subr.mxu0 0.0
    %1630 = vmatpush1.xpose.msra.mxu0 0.0
    %1631 = vmatprep.subr.mxu0 0.0
    %1632 = vmatpush1.xpose.msra.mxu0 0.0
    %1633 = vmatprep.subr.mxu0 0.0
    %1634 = vmatpush1.xpose.msra.mxu0 0.0
    %1635 = vmatprep.subr.mxu0 0.0
    %1636 = vmatpush1.xpose.msra.mxu0 0.0
    %1637 = vmatprep.subr.mxu0 0.0
    %1638 = vmatpush1.xpose.msra.mxu0 0.0
    %1639 = vmatprep.mubr.f32.mxu0 0.0
    %1640 = vmatmul.mubr.f32.gmra.mrb[0].mxu0 %v1552
    %v1641 = vpop.f32.mrb[0].mxu0
    %v1642 = vadd.f32 0.0, %v1641
    %v1643 = vpop.f32.mrb[0].mxu0
    %1644 = vmatprep.mubr.f32.mxu0 0.0
    %1645 = vmatmul.mubr.f32.gmra.mrb[0].mxu0 %v1555
    %v1646 = vpop.f32.mrb[0].mxu0
    %v1647 = vadd.f32 0.0, %v1646
    %v1648 = vpop.f32.mrb[0].mxu0
    %1649 = vmatprep.mubr.f32.mxu0 0.0
    %1650 = vmatmul.mubr.f32.gmra.mrb[0].mxu0 %v1558
    %v1651 = vpop.f32.mrb[0].mxu0
    %v1652 = vadd.f32 0.0, %v1651
    %v1653 = vpop.f32.mrb[0].mxu0
    %1654 = vmatprep.mubr.f32.mxu0 0.0
    %1655 = vmatmul.mubr.f32.gmra.mrb[0].mxu0 %v1561
    %v1656 = vpop.f32.mrb[0].mxu0
    %v1657 = vadd.f32 0.0, %v1656
    %v1658 = vpop.f32.mrb[0].mxu0
    %1659 = vmatprep.mubr.f32.mxu0 0.0
    %1660 = vmatmul.mubr.f32.gmra.mrb[0].mxu0 %v1564
    %v1661 = vpop.f32.mrb[0].mxu0
    %v1662 = vadd.f32 0.0, %v1661
    %v1663 = vpop.f32.mrb[0].mxu0
    %1664 = vmatprep.mubr.f32.mxu0 0.0
    %1665 = vmatmul.mubr.f32.gmra.mrb[0].mxu0 %v1567
    %v1666 = vpop.f32.mrb[0].mxu0
    %v1667 = vadd.f32 0.0, %v1666
    %v1668 = vpop.f32.mrb[0].mxu0
    %1669 = vdwg.mxu0
    %s1670 = scalar_lea.vmem %s0, 192
    %v1671 = vld [vmem:[%s1670] sm:$0xff]
    %v1672 = vld [vmem:[%s1670 + $0x8] sm:$0xff]
    %v1673 = vld [vmem:[%s1670 + $0x10] sm:$0xff]
    %v1674 = vld [vmem:[%s1670 + $0x18] sm:$0xff]
    %s1675 = scalar_lea.vmem %s1, 192
    %v1676 = vld [vmem:[%s1675] sm:$0xff]
    %v1677 = vld [vmem:[%s1675 + $0x8] sm:$0xff]
    %v1678 = vld [vmem:[%s1675 + $0x10] sm:$0xff]
    %v1679 = vld [vmem:[%s1675 + $0x18] sm:$0xff]
    %s1680 = scalar_lea.vmem %s2, 288
    %v1681 = vld [vmem:[%s1680] sm:$0xff]
    %v1682 = vld [vmem:[%s1680 + $0x8] sm:$0xff]
    %v1683 = vld [vmem:[%s1680 + $0x10] sm:$0xff]
    %v1684 = vld [vmem:[%s1680 + $0x18] sm:$0xff]
    %v1685 = vld [vmem:[%s1680 + $0x20] sm:$0xff]
    %v1686 = vld [vmem:[%s1680 + $0x28] sm:$0xff]
    %1687 = vxpose.xlu0.b32.start [1/16] %v1671, 128
    %1688 = vxpose.xlu0.b32.cont [2/16] %v1672, 128
    %1689 = vxpose.xlu0.b32.cont [3/16] %v1673, 128
    %1690 = vxpose.xlu0.b32.cont [4/16] %v1674, 128
    %1691 = vxpose.xlu0.b32.cont [5/16] 0.0, 128
    %1692 = vxpose.xlu0.b32.cont [6/16] 0.0, 128
    %1693 = vxpose.xlu0.b32.cont [7/16] 0.0, 128
    %1694 = vxpose.xlu0.b32.cont [8/16] 0.0, 128
    %1695 = vxpose.xlu0.b32.cont [9/16] 0.0, 128
    %1696 = vxpose.xlu0.b32.cont [10/16] 0.0, 128
    %1697 = vxpose.xlu0.b32.cont [11/16] 0.0, 128
    %1698 = vxpose.xlu0.b32.cont [12/16] 0.0, 128
    %1699 = vxpose.xlu0.b32.cont [13/16] 0.0, 128
    %1700 = vxpose.xlu0.b32.cont [14/16] 0.0, 128
    %1701 = vxpose.xlu0.b32.cont [15/16] 0.0, 128
    %1702 = vxpose.xlu0.b32.end [16/16] 0.0, 128
    %v1703 = vpop.trf.xlu0
    %v1704 = vpop.trf.xlu0
    %v1705 = vpop.trf.xlu0
    %v1706 = vpop.trf.xlu0
    %v1707 = vpop.trf.xlu0
    %v1708 = vpop.trf.xlu0
    %v1709 = vpop.trf.xlu0
    %v1710 = vpop.trf.xlu0
    %v1711 = vpop.trf.xlu0
    %v1712 = vpop.trf.xlu0
    %v1713 = vpop.trf.xlu0
    %v1714 = vpop.trf.xlu0
    %v1715 = vpop.trf.xlu0
    %v1716 = vpop.trf.xlu0
    %v1717 = vpop.trf.xlu0
    %v1718 = vpop.trf.xlu0
    %v1720 = vsel %vm61, %v1703, 0
    %v1723 = vsel %vm61, %v1704, 0
    %1725 = vmatprep.subr.mxu0 0.0
    %1726 = vmatpush1.msra.mxu0 %v1676
    %1727 = vmatprep.subr.mxu0 0.0
    %1728 = vmatpush1.msra.mxu0 %v1677
    %1729 = vmatprep.subr.mxu0 0.0
    %1730 = vmatpush1.msra.mxu0 %v1678
    %1731 = vmatprep.subr.mxu0 0.0
    %1732 = vmatpush1.msra.mxu0 %v1679
    %1733 = vmatprep.subr.mxu0 0.0
    %1734 = vmatpush1.msra.mxu0 0.0
    %1735 = vmatprep.subr.mxu0 0.0
    %1736 = vmatpush1.msra.mxu0 0.0
    %1737 = vmatprep.subr.mxu0 0.0
    %1738 = vmatpush1.msra.mxu0 0.0
    %1739 = vmatprep.subr.mxu0 0.0
    %1740 = vmatpush1.msra.mxu0 0.0
    %1741 = vmatprep.subr.mxu0 0.0
    %1742 = vmatpush1.msra.mxu0 0.0
    %1743 = vmatprep.subr.mxu0 0.0
    %1744 = vmatpush1.msra.mxu0 0.0
    %1745 = vmatprep.subr.mxu0 0.0
    %1746 = vmatpush1.msra.mxu0 0.0
    %1747 = vmatprep.subr.mxu0 0.0
    %1748 = vmatpush1.msra.mxu0 0.0
    %1749 = vmatprep.subr.mxu0 0.0
    %1750 = vmatpush1.msra.mxu0 0.0
    %1751 = vmatprep.subr.mxu0 0.0
    %1752 = vmatpush1.msra.mxu0 0.0
    %1753 = vmatprep.subr.mxu0 0.0
    %1754 = vmatpush1.msra.mxu0 0.0
    %1755 = vmatprep.subr.mxu0 0.0
    %1756 = vmatpush1.msra.mxu0 0.0
    %1757 = vmatprep.subr.mxu0 0.0
    %1758 = vmatpush1.msra.mxu0 0.0
    %1759 = vmatprep.subr.mxu0 0.0
    %1760 = vmatpush1.msra.mxu0 0.0
    %1761 = vmatprep.subr.mxu0 0.0
    %1762 = vmatpush1.msra.mxu0 0.0
    %1763 = vmatprep.subr.mxu0 0.0
    %1764 = vmatpush1.msra.mxu0 0.0
    %1765 = vmatprep.subr.mxu0 0.0
    %1766 = vmatpush1.msra.mxu0 0.0
    %1767 = vmatprep.subr.mxu0 0.0
    %1768 = vmatpush1.msra.mxu0 0.0
    %1769 = vmatprep.subr.mxu0 0.0
    %1770 = vmatpush1.msra.mxu0 0.0
    %1771 = vmatprep.subr.mxu0 0.0
    %1772 = vmatpush1.msra.mxu0 0.0
    %1773 = vmatprep.subr.mxu0 0.0
    %1774 = vmatpush1.msra.mxu0 0.0
    %1775 = vmatprep.subr.mxu0 0.0
    %1776 = vmatpush1.msra.mxu0 0.0
    %1777 = vmatprep.subr.mxu0 0.0
    %1778 = vmatpush1.msra.mxu0 0.0
    %1779 = vmatprep.subr.mxu0 0.0
    %1780 = vmatpush1.msra.mxu0 0.0
    %1781 = vmatprep.subr.mxu0 0.0
    %1782 = vmatpush1.msra.mxu0 0.0
    %1783 = vmatprep.subr.mxu0 0.0
    %1784 = vmatpush1.msra.mxu0 0.0
    %1785 = vmatprep.subr.mxu0 0.0
    %1786 = vmatpush1.msra.mxu0 0.0
    %1787 = vmatprep.subr.mxu0 0.0
    %1788 = vmatpush1.msra.mxu0 0.0
    %1789 = vmatprep.mubr.f32.mxu0 0.0
    %1790 = vmatmul.mubr.f32.gmra.mrb[0].mxu0 %v1720
    %v1791 = vpop.f32.mrb[0].mxu0
    %v1792 = vadd.f32 0.0, %v1791
    %v1793 = vpop.f32.mrb[0].mxu0
    %1794 = vmatprep.mubr.f32.mxu0 0.0
    %1795 = vmatmul.mubr.f32.gmra.mrb[0].mxu0 %v1723
    %v1796 = vpop.f32.mrb[0].mxu0
    %v1797 = vadd.f32 0.0, %v1796
    %v1798 = vpop.f32.mrb[0].mxu0
    %1799 = vdwg.mxu0
    %v1800 = vsel %vm143, %v1792, -inf
    %v1801 = vsel %vm143, %v1797, -inf
    %v1802 = vmax.f32 %v1800, %v1801
    %v1803 = vrot.slane %v1802, 4
    %v1804 = vmax.f32 %v1802, %v1803
    %v1805 = vrot.slane %v1804, 2
    %v1806 = vmax.f32 %v1804, %v1805
    %v1807 = vrot.slane %v1806, 1
    %v1808 = vmax.f32 %v1806, %v1807
    %v1809 = vsub.f32 %v1792, %v1808
    %v1810 = vsub.f32 %v1797, %v1808
    %v1811 = vmul.f32 %v1809, 1.442695
    %v1812 = vpow.pop %v1811
    %v1813 = vmul.f32 %v1810, 1.442695
    %v1814 = vpow.pop %v1813
    %v1815 = vsel %vm143, %v1812, 0.0
    %v1816 = vsel %vm143, %v1814, 0.0
    %v1817 = vadd.f32 %v1815, %v1816
    %v1818 = vrot.slane %v1817, 4
    %v1819 = vadd.f32 %v1817, %v1818
    %v1820 = vrot.slane %v1819, 2
    %v1821 = vadd.f32 %v1819, %v1820
    %v1822 = vrot.slane %v1821, 1
    %v1823 = vadd.f32 %v1821, %v1822
    %v1824 = vrcp.pop %v1823
    %v1825 = vmul.f32 %v1812, %v1824
    %v1826 = vmul.f32 %v1814, %v1824
    %v1828 = vsel %vm143, %v1681, 0
    %v1831 = vsel %vm143, %v1682, 0
    %v1834 = vsel %vm143, %v1683, 0
    %v1837 = vsel %vm143, %v1684, 0
    %v1840 = vsel %vm143, %v1685, 0
    %v1843 = vsel %vm143, %v1686, 0
    %v1846 = vsel %vm143, %v1825, 0
    %v1849 = vsel %vm143, %v1826, 0
    %1851 = vmatprep.subr.mxu0 0.0
    %1852 = vmatpush1.xpose.msra.mxu0 %v1846
    %1853 = vmatprep.subr.mxu0 0.0
    %1854 = vmatpush1.xpose.msra.mxu0 %v1849
    %1855 = vmatprep.subr.mxu0 0.0
    %1856 = vmatpush1.xpose.msra.mxu0 0.0
    %1857 = vmatprep.subr.mxu0 0.0
    %1858 = vmatpush1.xpose.msra.mxu0 0.0
    %1859 = vmatprep.subr.mxu0 0.0
    %1860 = vmatpush1.xpose.msra.mxu0 0.0
    %1861 = vmatprep.subr.mxu0 0.0
    %1862 = vmatpush1.xpose.msra.mxu0 0.0
    %1863 = vmatprep.subr.mxu0 0.0
    %1864 = vmatpush1.xpose.msra.mxu0 0.0
    %1865 = vmatprep.subr.mxu0 0.0
    %1866 = vmatpush1.xpose.msra.mxu0 0.0
    %1867 = vmatprep.subr.mxu0 0.0
    %1868 = vmatpush1.xpose.msra.mxu0 0.0
    %1869 = vmatprep.subr.mxu0 0.0
    %1870 = vmatpush1.xpose.msra.mxu0 0.0
    %1871 = vmatprep.subr.mxu0 0.0
    %1872 = vmatpush1.xpose.msra.mxu0 0.0
    %1873 = vmatprep.subr.mxu0 0.0
    %1874 = vmatpush1.xpose.msra.mxu0 0.0
    %1875 = vmatprep.subr.mxu0 0.0
    %1876 = vmatpush1.xpose.msra.mxu0 0.0
    %1877 = vmatprep.subr.mxu0 0.0
    %1878 = vmatpush1.xpose.msra.mxu0 0.0
    %1879 = vmatprep.subr.mxu0 0.0
    %1880 = vmatpush1.xpose.msra.mxu0 0.0
    %1881 = vmatprep.subr.mxu0 0.0
    %1882 = vmatpush1.xpose.msra.mxu0 0.0
    %1883 = vmatprep.subr.mxu0 0.0
    %1884 = vmatpush1.xpose.msra.mxu0 0.0
    %1885 = vmatprep.subr.mxu0 0.0
    %1886 = vmatpush1.xpose.msra.mxu0 0.0
    %1887 = vmatprep.subr.mxu0 0.0
    %1888 = vmatpush1.xpose.msra.mxu0 0.0
    %1889 = vmatprep.subr.mxu0 0.0
    %1890 = vmatpush1.xpose.msra.mxu0 0.0
    %1891 = vmatprep.subr.mxu0 0.0
    %1892 = vmatpush1.xpose.msra.mxu0 0.0
    %1893 = vmatprep.subr.mxu0 0.0
    %1894 = vmatpush1.xpose.msra.mxu0 0.0
    %1895 = vmatprep.subr.mxu0 0.0
    %1896 = vmatpush1.xpose.msra.mxu0 0.0
    %1897 = vmatprep.subr.mxu0 0.0
    %1898 = vmatpush1.xpose.msra.mxu0 0.0
    %1899 = vmatprep.subr.mxu0 0.0
    %1900 = vmatpush1.xpose.msra.mxu0 0.0
    %1901 = vmatprep.subr.mxu0 0.0
    %1902 = vmatpush1.xpose.msra.mxu0 0.0
    %1903 = vmatprep.subr.mxu0 0.0
    %1904 = vmatpush1.xpose.msra.mxu0 0.0
    %1905 = vmatprep.subr.mxu0 0.0
    %1906 = vmatpush1.xpose.msra.mxu0 0.0
    %1907 = vmatprep.subr.mxu0 0.0
    %1908 = vmatpush1.xpose.msra.mxu0 0.0
    %1909 = vmatprep.subr.mxu0 0.0
    %1910 = vmatpush1.xpose.msra.mxu0 0.0
    %1911 = vmatprep.subr.mxu0 0.0
    %1912 = vmatpush1.xpose.msra.mxu0 0.0
    %1913 = vmatprep.subr.mxu0 0.0
    %1914 = vmatpush1.xpose.msra.mxu0 0.0
    %1915 = vmatprep.mubr.f32.mxu0 0.0
    %1916 = vmatmul.mubr.f32.gmra.mrb[0].mxu0 %v1828
    %v1917 = vpop.f32.mrb[0].mxu0
    %v1918 = vadd.f32 0.0, %v1917
    %v1919 = vpop.f32.mrb[0].mxu0
    %1920 = vmatprep.mubr.f32.mxu0 0.0
    %1921 = vmatmul.mubr.f32.gmra.mrb[0].mxu0 %v1831
    %v1922 = vpop.f32.mrb[0].mxu0
    %v1923 = vadd.f32 0.0, %v1922
    %v1924 = vpop.f32.mrb[0].mxu0
    %1925 = vmatprep.mubr.f32.mxu0 0.0
    %1926 = vmatmul.mubr.f32.gmra.mrb[0].mxu0 %v1834
    %v1927 = vpop.f32.mrb[0].mxu0
    %v1928 = vadd.f32 0.0, %v1927
    %v1929 = vpop.f32.mrb[0].mxu0
    %1930 = vmatprep.mubr.f32.mxu0 0.0
    %1931 = vmatmul.mubr.f32.gmra.mrb[0].mxu0 %v1837
    %v1932 = vpop.f32.mrb[0].mxu0
    %v1933 = vadd.f32 0.0, %v1932
    %v1934 = vpop.f32.mrb[0].mxu0
    %1935 = vmatprep.mubr.f32.mxu0 0.0
    %1936 = vmatmul.mubr.f32.gmra.mrb[0].mxu0 %v1840
    %v1937 = vpop.f32.mrb[0].mxu0
    %v1938 = vadd.f32 0.0, %v1937
    %v1939 = vpop.f32.mrb[0].mxu0
    %1940 = vmatprep.mubr.f32.mxu0 0.0
    %1941 = vmatmul.mubr.f32.gmra.mrb[0].mxu0 %v1843
    %v1942 = vpop.f32.mrb[0].mxu0
    %v1943 = vadd.f32 0.0, %v1942
    %v1944 = vpop.f32.mrb[0].mxu0
    %1945 = vdwg.mxu0
    %s1946 = scalar_lea.vmem %s0, 224
    %v1947 = vld [vmem:[%s1946] sm:$0xff]
    %v1948 = vld [vmem:[%s1946 + $0x8] sm:$0xff]
    %v1949 = vld [vmem:[%s1946 + $0x10] sm:$0xff]
    %v1950 = vld [vmem:[%s1946 + $0x18] sm:$0xff]
    %s1951 = scalar_lea.vmem %s1, 224
    %v1952 = vld [vmem:[%s1951] sm:$0xff]
    %v1953 = vld [vmem:[%s1951 + $0x8] sm:$0xff]
    %v1954 = vld [vmem:[%s1951 + $0x10] sm:$0xff]
    %v1955 = vld [vmem:[%s1951 + $0x18] sm:$0xff]
    %s1956 = scalar_lea.vmem %s2, 336
    %v1957 = vld [vmem:[%s1956] sm:$0xff]
    %v1958 = vld [vmem:[%s1956 + $0x8] sm:$0xff]
    %v1959 = vld [vmem:[%s1956 + $0x10] sm:$0xff]
    %v1960 = vld [vmem:[%s1956 + $0x18] sm:$0xff]
    %v1961 = vld [vmem:[%s1956 + $0x20] sm:$0xff]
    %v1962 = vld [vmem:[%s1956 + $0x28] sm:$0xff]
    %1963 = vxpose.xlu0.b32.start [1/16] %v1947, 128
    %1964 = vxpose.xlu0.b32.cont [2/16] %v1948, 128
    %1965 = vxpose.xlu0.b32.cont [3/16] %v1949, 128
    %1966 = vxpose.xlu0.b32.cont [4/16] %v1950, 128
    %1967 = vxpose.xlu0.b32.cont [5/16] 0.0, 128
    %1968 = vxpose.xlu0.b32.cont [6/16] 0.0, 128
    %1969 = vxpose.xlu0.b32.cont [7/16] 0.0, 128
    %1970 = vxpose.xlu0.b32.cont [8/16] 0.0, 128
    %1971 = vxpose.xlu0.b32.cont [9/16] 0.0, 128
    %1972 = vxpose.xlu0.b32.cont [10/16] 0.0, 128
    %1973 = vxpose.xlu0.b32.cont [11/16] 0.0, 128
    %1974 = vxpose.xlu0.b32.cont [12/16] 0.0, 128
    %1975 = vxpose.xlu0.b32.cont [13/16] 0.0, 128
    %1976 = vxpose.xlu0.b32.cont [14/16] 0.0, 128
    %1977 = vxpose.xlu0.b32.cont [15/16] 0.0, 128
    %1978 = vxpose.xlu0.b32.end [16/16] 0.0, 128
    %v1979 = vpop.trf.xlu0
    %v1980 = vpop.trf.xlu0
    %v1981 = vpop.trf.xlu0
    %v1982 = vpop.trf.xlu0
    %v1983 = vpop.trf.xlu0
    %v1984 = vpop.trf.xlu0
    %v1985 = vpop.trf.xlu0
    %v1986 = vpop.trf.xlu0
    %v1987 = vpop.trf.xlu0
    %v1988 = vpop.trf.xlu0
    %v1989 = vpop.trf.xlu0
    %v1990 = vpop.trf.xlu0
    %v1991 = vpop.trf.xlu0
    %v1992 = vpop.trf.xlu0
    %v1993 = vpop.trf.xlu0
    %v1994 = vpop.trf.xlu0
    %v1996 = vsel %vm61, %v1979, 0
    %v1999 = vsel %vm61, %v1980, 0
    %2001 = vmatprep.subr.mxu0 0.0
    %2002 = vmatpush1.msra.mxu0 %v1952
    %2003 = vmatprep.subr.mxu0 0.0
    %2004 = vmatpush1.msra.mxu0 %v1953
    %2005 = vmatprep.subr.mxu0 0.0
    %2006 = vmatpush1.msra.mxu0 %v1954
    %2007 = vmatprep.subr.mxu0 0.0
    %2008 = vmatpush1.msra.mxu0 %v1955
    %2009 = vmatprep.subr.mxu0 0.0
    %2010 = vmatpush1.msra.mxu0 0.0
    %2011 = vmatprep.subr.mxu0 0.0
    %2012 = vmatpush1.msra.mxu0 0.0
    %2013 = vmatprep.subr.mxu0 0.0
    %2014 = vmatpush1.msra.mxu0 0.0
    %2015 = vmatprep.subr.mxu0 0.0
    %2016 = vmatpush1.msra.mxu0 0.0
    %2017 = vmatprep.subr.mxu0 0.0
    %2018 = vmatpush1.msra.mxu0 0.0
    %2019 = vmatprep.subr.mxu0 0.0
    %2020 = vmatpush1.msra.mxu0 0.0
    %2021 = vmatprep.subr.mxu0 0.0
    %2022 = vmatpush1.msra.mxu0 0.0
    %2023 = vmatprep.subr.mxu0 0.0
    %2024 = vmatpush1.msra.mxu0 0.0
    %2025 = vmatprep.subr.mxu0 0.0
    %2026 = vmatpush1.msra.mxu0 0.0
    %2027 = vmatprep.subr.mxu0 0.0
    %2028 = vmatpush1.msra.mxu0 0.0
    %2029 = vmatprep.subr.mxu0 0.0
    %2030 = vmatpush1.msra.mxu0 0.0
    %2031 = vmatprep.subr.mxu0 0.0
    %2032 = vmatpush1.msra.mxu0 0.0
    %2033 = vmatprep.subr.mxu0 0.0
    %2034 = vmatpush1.msra.mxu0 0.0
    %2035 = vmatprep.subr.mxu0 0.0
    %2036 = vmatpush1.msra.mxu0 0.0
    %2037 = vmatprep.subr.mxu0 0.0
    %2038 = vmatpush1.msra.mxu0 0.0
    %2039 = vmatprep.subr.mxu0 0.0
    %2040 = vmatpush1.msra.mxu0 0.0
    %2041 = vmatprep.subr.mxu0 0.0
    %2042 = vmatpush1.msra.mxu0 0.0
    %2043 = vmatprep.subr.mxu0 0.0
    %2044 = vmatpush1.msra.mxu0 0.0
    %2045 = vmatprep.subr.mxu0 0.0
    %2046 = vmatpush1.msra.mxu0 0.0
    %2047 = vmatprep.subr.mxu0 0.0
    %2048 = vmatpush1.msra.mxu0 0.0
    %2049 = vmatprep.subr.mxu0 0.0
    %2050 = vmatpush1.msra.mxu0 0.0
    %2051 = vmatprep.subr.mxu0 0.0
    %2052 = vmatpush1.msra.mxu0 0.0
    %2053 = vmatprep.subr.mxu0 0.0
    %2054 = vmatpush1.msra.mxu0 0.0
    %2055 = vmatprep.subr.mxu0 0.0
    %2056 = vmatpush1.msra.mxu0 0.0
    %2057 = vmatprep.subr.mxu0 0.0
    %2058 = vmatpush1.msra.mxu0 0.0
    %2059 = vmatprep.subr.mxu0 0.0
    %2060 = vmatpush1.msra.mxu0 0.0
    %2061 = vmatprep.subr.mxu0 0.0
    %2062 = vmatpush1.msra.mxu0 0.0
    %2063 = vmatprep.subr.mxu0 0.0
    %2064 = vmatpush1.msra.mxu0 0.0
    %2065 = vmatprep.mubr.f32.mxu0 0.0
    %2066 = vmatmul.mubr.f32.gmra.mrb[0].mxu0 %v1996
    %v2067 = vpop.f32.mrb[0].mxu0
    %v2068 = vadd.f32 0.0, %v2067
    %v2069 = vpop.f32.mrb[0].mxu0
    %2070 = vmatprep.mubr.f32.mxu0 0.0
    %2071 = vmatmul.mubr.f32.gmra.mrb[0].mxu0 %v1999
    %v2072 = vpop.f32.mrb[0].mxu0
    %v2073 = vadd.f32 0.0, %v2072
    %v2074 = vpop.f32.mrb[0].mxu0
    %2075 = vdwg.mxu0
    %v2076 = vsel %vm143, %v2068, -inf
    %v2077 = vsel %vm143, %v2073, -inf
    %v2078 = vmax.f32 %v2076, %v2077
    %v2079 = vrot.slane %v2078, 4
    %v2080 = vmax.f32 %v2078, %v2079
    %v2081 = vrot.slane %v2080, 2
    %v2082 = vmax.f32 %v2080, %v2081
    %v2083 = vrot.slane %v2082, 1
    %v2084 = vmax.f32 %v2082, %v2083
    %v2085 = vsub.f32 %v2068, %v2084
    %v2086 = vsub.f32 %v2073, %v2084
    %v2087 = vmul.f32 %v2085, 1.442695
    %v2088 = vpow.pop %v2087
    %v2089 = vmul.f32 %v2086, 1.442695
    %v2090 = vpow.pop %v2089
    %v2091 = vsel %vm143, %v2088, 0.0
    %v2092 = vsel %vm143, %v2090, 0.0
    %v2093 = vadd.f32 %v2091, %v2092
    %v2094 = vrot.slane %v2093, 4
    %v2095 = vadd.f32 %v2093, %v2094
    %v2096 = vrot.slane %v2095, 2
    %v2097 = vadd.f32 %v2095, %v2096
    %v2098 = vrot.slane %v2097, 1
    %v2099 = vadd.f32 %v2097, %v2098
    %v2100 = vrcp.pop %v2099
    %v2101 = vmul.f32 %v2088, %v2100
    %v2102 = vmul.f32 %v2090, %v2100
    %v2104 = vsel %vm143, %v1957, 0
    %v2107 = vsel %vm143, %v1958, 0
    %v2110 = vsel %vm143, %v1959, 0
    %v2113 = vsel %vm143, %v1960, 0
    %v2116 = vsel %vm143, %v1961, 0
    %v2119 = vsel %vm143, %v1962, 0
    %v2122 = vsel %vm143, %v2101, 0
    %v2125 = vsel %vm143, %v2102, 0
    %2127 = vmatprep.subr.mxu0 0.0
    %2128 = vmatpush1.xpose.msra.mxu0 %v2122
    %2129 = vmatprep.subr.mxu0 0.0
    %2130 = vmatpush1.xpose.msra.mxu0 %v2125
    %2131 = vmatprep.subr.mxu0 0.0
    %2132 = vmatpush1.xpose.msra.mxu0 0.0
    %2133 = vmatprep.subr.mxu0 0.0
    %2134 = vmatpush1.xpose.msra.mxu0 0.0
    %2135 = vmatprep.subr.mxu0 0.0
    %2136 = vmatpush1.xpose.msra.mxu0 0.0
    %2137 = vmatprep.subr.mxu0 0.0
    %2138 = vmatpush1.xpose.msra.mxu0 0.0
    %2139 = vmatprep.subr.mxu0 0.0
    %2140 = vmatpush1.xpose.msra.mxu0 0.0
    %2141 = vmatprep.subr.mxu0 0.0
    %2142 = vmatpush1.xpose.msra.mxu0 0.0
    %2143 = vmatprep.subr.mxu0 0.0
    %2144 = vmatpush1.xpose.msra.mxu0 0.0
    %2145 = vmatprep.subr.mxu0 0.0
    %2146 = vmatpush1.xpose.msra.mxu0 0.0
    %2147 = vmatprep.subr.mxu0 0.0
    %2148 = vmatpush1.xpose.msra.mxu0 0.0
    %2149 = vmatprep.subr.mxu0 0.0
    %2150 = vmatpush1.xpose.msra.mxu0 0.0
    %2151 = vmatprep.subr.mxu0 0.0
    %2152 = vmatpush1.xpose.msra.mxu0 0.0
    %2153 = vmatprep.subr.mxu0 0.0
    %2154 = vmatpush1.xpose.msra.mxu0 0.0
    %2155 = vmatprep.subr.mxu0 0.0
    %2156 = vmatpush1.xpose.msra.mxu0 0.0
    %2157 = vmatprep.subr.mxu0 0.0
    %2158 = vmatpush1.xpose.msra.mxu0 0.0
    %2159 = vmatprep.subr.mxu0 0.0
    %2160 = vmatpush1.xpose.msra.mxu0 0.0
    %2161 = vmatprep.subr.mxu0 0.0
    %2162 = vmatpush1.xpose.msra.mxu0 0.0
    %2163 = vmatprep.subr.mxu0 0.0
    %2164 = vmatpush1.xpose.msra.mxu0 0.0
    %2165 = vmatprep.subr.mxu0 0.0
    %2166 = vmatpush1.xpose.msra.mxu0 0.0
    %2167 = vmatprep.subr.mxu0 0.0
    %2168 = vmatpush1.xpose.msra.mxu0 0.0
    %2169 = vmatprep.subr.mxu0 0.0
    %2170 = vmatpush1.xpose.msra.mxu0 0.0
    %2171 = vmatprep.subr.mxu0 0.0
    %2172 = vmatpush1.xpose.msra.mxu0 0.0
    %2173 = vmatprep.subr.mxu0 0.0
    %2174 = vmatpush1.xpose.msra.mxu0 0.0
    %2175 = vmatprep.subr.mxu0 0.0
    %2176 = vmatpush1.xpose.msra.mxu0 0.0
    %2177 = vmatprep.subr.mxu0 0.0
    %2178 = vmatpush1.xpose.msra.mxu0 0.0
    %2179 = vmatprep.subr.mxu0 0.0
    %2180 = vmatpush1.xpose.msra.mxu0 0.0
    %2181 = vmatprep.subr.mxu0 0.0
    %2182 = vmatpush1.xpose.msra.mxu0 0.0
    %2183 = vmatprep.subr.mxu0 0.0
    %2184 = vmatpush1.xpose.msra.mxu0 0.0
    %2185 = vmatprep.subr.mxu0 0.0
    %2186 = vmatpush1.xpose.msra.mxu0 0.0
    %2187 = vmatprep.subr.mxu0 0.0
    %2188 = vmatpush1.xpose.msra.mxu0 0.0
    %2189 = vmatprep.subr.mxu0 0.0
    %2190 = vmatpush1.xpose.msra.mxu0 0.0
    %2191 = vmatprep.mubr.f32.mxu0 0.0
    %2192 = vmatmul.mubr.f32.gmra.mrb[0].mxu0 %v2104
    %v2193 = vpop.f32.mrb[0].mxu0
    %v2194 = vadd.f32 0.0, %v2193
    %v2195 = vpop.f32.mrb[0].mxu0
    %2196 = vmatprep.mubr.f32.mxu0 0.0
    %2197 = vmatmul.mubr.f32.gmra.mrb[0].mxu0 %v2107
    %v2198 = vpop.f32.mrb[0].mxu0
    %v2199 = vadd.f32 0.0, %v2198
    %v2200 = vpop.f32.mrb[0].mxu0
    %2201 = vmatprep.mubr.f32.mxu0 0.0
    %2202 = vmatmul.mubr.f32.gmra.mrb[0].mxu0 %v2110
    %v2203 = vpop.f32.mrb[0].mxu0
    %v2204 = vadd.f32 0.0, %v2203
    %v2205 = vpop.f32.mrb[0].mxu0
    %2206 = vmatprep.mubr.f32.mxu0 0.0
    %2207 = vmatmul.mubr.f32.gmra.mrb[0].mxu0 %v2113
    %v2208 = vpop.f32.mrb[0].mxu0
    %v2209 = vadd.f32 0.0, %v2208
    %v2210 = vpop.f32.mrb[0].mxu0
    %2211 = vmatprep.mubr.f32.mxu0 0.0
    %2212 = vmatmul.mubr.f32.gmra.mrb[0].mxu0 %v2116
    %v2213 = vpop.f32.mrb[0].mxu0
    %v2214 = vadd.f32 0.0, %v2213
    %v2215 = vpop.f32.mrb[0].mxu0
    %2216 = vmatprep.mubr.f32.mxu0 0.0
    %2217 = vmatmul.mubr.f32.gmra.mrb[0].mxu0 %v2119
    %v2218 = vpop.f32.mrb[0].mxu0
    %v2219 = vadd.f32 0.0, %v2218
    %v2220 = vpop.f32.mrb[0].mxu0
    %2221 = vdwg.mxu0
    %2228 = vrot.lane.b32.xlu0 %v538, 16
    %v2229 = vpop.permute.xlu0 %2228
    %2230 = vrot.lane.b32.xlu0 %v543, 16
    %v2231 = vpop.permute.xlu0 %2230
    %2232 = vrot.lane.b32.xlu0 %v548, 16
    %v2233 = vpop.permute.xlu0 %2232
    %2234 = vrot.lane.b32.xlu0 %v553, 16
    %v2235 = vpop.permute.xlu0 %2234
    %2236 = vrot.lane.b32.xlu0 %v558, 16
    %v2237 = vpop.permute.xlu0 %2236
    %2238 = vrot.lane.b32.xlu0 %v563, 16
    %v2239 = vpop.permute.xlu0 %2238
    %2252 = vrot.lane.b32.xlu0 %v814, 32
    %v2253 = vpop.permute.xlu0 %2252
    %2254 = vrot.lane.b32.xlu0 %v819, 32
    %v2255 = vpop.permute.xlu0 %2254
    %2256 = vrot.lane.b32.xlu0 %v824, 32
    %v2257 = vpop.permute.xlu0 %2256
    %2258 = vrot.lane.b32.xlu0 %v829, 32
    %v2259 = vpop.permute.xlu0 %2258
    %2260 = vrot.lane.b32.xlu0 %v834, 32
    %v2261 = vpop.permute.xlu0 %2260
    %2262 = vrot.lane.b32.xlu0 %v839, 32
    %v2263 = vpop.permute.xlu0 %2262
    %2276 = vrot.lane.b32.xlu0 %v1090, 48
    %v2277 = vpop.permute.xlu0 %2276
    %2278 = vrot.lane.b32.xlu0 %v1095, 48
    %v2279 = vpop.permute.xlu0 %2278
    %2280 = vrot.lane.b32.xlu0 %v1100, 48
    %v2281 = vpop.permute.xlu0 %2280
    %2282 = vrot.lane.b32.xlu0 %v1105, 48
    %v2283 = vpop.permute.xlu0 %2282
    %2284 = vrot.lane.b32.xlu0 %v1110, 48
    %v2285 = vpop.permute.xlu0 %2284
    %2286 = vrot.lane.b32.xlu0 %v1115, 48
    %v2287 = vpop.permute.xlu0 %2286
    %2300 = vrot.lane.b32.xlu0 %v1366, 64
    %v2301 = vpop.permute.xlu0 %2300
    %2302 = vrot.lane.b32.xlu0 %v1371, 64
    %v2303 = vpop.permute.xlu0 %2302
    %2304 = vrot.lane.b32.xlu0 %v1376, 64
    %v2305 = vpop.permute.xlu0 %2304
    %2306 = vrot.lane.b32.xlu0 %v1381, 64
    %v2307 = vpop.permute.xlu0 %2306
    %2308 = vrot.lane.b32.xlu0 %v1386, 64
    %v2309 = vpop.permute.xlu0 %2308
    %2310 = vrot.lane.b32.xlu0 %v1391, 64
    %v2311 = vpop.permute.xlu0 %2310
    %2324 = vrot.lane.b32.xlu0 %v1642, 80
    %v2325 = vpop.permute.xlu0 %2324
    %2326 = vrot.lane.b32.xlu0 %v1647, 80
    %v2327 = vpop.permute.xlu0 %2326
    %2328 = vrot.lane.b32.xlu0 %v1652, 80
    %v2329 = vpop.permute.xlu0 %2328
    %2330 = vrot.lane.b32.xlu0 %v1657, 80
    %v2331 = vpop.permute.xlu0 %2330
    %2332 = vrot.lane.b32.xlu0 %v1662, 80
    %v2333 = vpop.permute.xlu0 %2332
    %2334 = vrot.lane.b32.xlu0 %v1667, 80
    %v2335 = vpop.permute.xlu0 %2334
    %2348 = vrot.lane.b32.xlu0 %v1918, 96
    %v2349 = vpop.permute.xlu0 %2348
    %2350 = vrot.lane.b32.xlu0 %v1923, 96
    %v2351 = vpop.permute.xlu0 %2350
    %2352 = vrot.lane.b32.xlu0 %v1928, 96
    %v2353 = vpop.permute.xlu0 %2352
    %2354 = vrot.lane.b32.xlu0 %v1933, 96
    %v2355 = vpop.permute.xlu0 %2354
    %2356 = vrot.lane.b32.xlu0 %v1938, 96
    %v2357 = vpop.permute.xlu0 %2356
    %2358 = vrot.lane.b32.xlu0 %v1943, 96
    %v2359 = vpop.permute.xlu0 %2358
    %2372 = vrot.lane.b32.xlu0 %v2194, 112
    %v2373 = vpop.permute.xlu0 %2372
    %2374 = vrot.lane.b32.xlu0 %v2199, 112
    %v2375 = vpop.permute.xlu0 %2374
    %2376 = vrot.lane.b32.xlu0 %v2204, 112
    %v2377 = vpop.permute.xlu0 %2376
    %2378 = vrot.lane.b32.xlu0 %v2209, 112
    %v2379 = vpop.permute.xlu0 %2378
    %2380 = vrot.lane.b32.xlu0 %v2214, 112
    %v2381 = vpop.permute.xlu0 %2380
    %2382 = vrot.lane.b32.xlu0 %v2219, 112
    %v2383 = vpop.permute.xlu0 %2382
    %vm2390 = vcmask 130048
    %v2391 = vsel %vm2390, %v262, %v2229
    %v2392 = vsel %vm2390, %v267, %v2231
    %v2393 = vsel %vm2390, %v272, %v2233
    %v2394 = vsel %vm2390, %v277, %v2235
    %v2395 = vsel %vm2390, %v282, %v2237
    %v2396 = vsel %vm2390, %v287, %v2239
    %v2397 = vsel %vm61, %v2391, %v2253
    %v2398 = vsel %vm61, %v2392, %v2255
    %v2399 = vsel %vm61, %v2393, %v2257
    %v2400 = vsel %vm61, %v2394, %v2259
    %v2401 = vsel %vm61, %v2395, %v2261
    %v2402 = vsel %vm61, %v2396, %v2263
    %vm2403 = vcmask 392192
    %v2404 = vsel %vm2403, %v2397, %v2277
    %v2405 = vsel %vm2403, %v2398, %v2279
    %v2406 = vsel %vm2403, %v2399, %v2281
    %v2407 = vsel %vm2403, %v2400, %v2283
    %v2408 = vsel %vm2403, %v2401, %v2285
    %v2409 = vsel %vm2403, %v2402, %v2287
    %vm2410 = vcmask 523264
    %v2411 = vsel %vm2410, %v2404, %v2301
    %v2412 = vsel %vm2410, %v2405, %v2303
    %v2413 = vsel %vm2410, %v2406, %v2305
    %v2414 = vsel %vm2410, %v2407, %v2307
    %v2415 = vsel %vm2410, %v2408, %v2309
    %v2416 = vsel %vm2410, %v2409, %v2311
    %vm2417 = vcmask 654336
    %v2418 = vsel %vm2417, %v2411, %v2325
    %v2419 = vsel %vm2417, %v2412, %v2327
    %v2420 = vsel %vm2417, %v2413, %v2329
    %v2421 = vsel %vm2417, %v2414, %v2331
    %v2422 = vsel %vm2417, %v2415, %v2333
    %v2423 = vsel %vm2417, %v2416, %v2335
    %vm2424 = vcmask 785408
    %v2425 = vsel %vm2424, %v2418, %v2349
    %v2426 = vsel %vm2424, %v2419, %v2351
    %v2427 = vsel %vm2424, %v2420, %v2353
    %v2428 = vsel %vm2424, %v2421, %v2355
    %v2429 = vsel %vm2424, %v2422, %v2357
    %v2430 = vsel %vm2424, %v2423, %v2359
    %vm2431 = vcmask 916480
    %v2432 = vsel %vm2431, %v2425, %v2373
    %v2433 = vsel %vm2431, %v2426, %v2375
    %v2434 = vsel %vm2431, %v2427, %v2377
    %v2435 = vsel %vm2431, %v2428, %v2379
    %v2436 = vsel %vm2431, %v2429, %v2381
    %v2437 = vsel %vm2431, %v2430, %v2383
    %2438 = vst [vmem:[#allocation2] sm:$0xff] %v2432
    %2439 = vst [vmem:[#allocation2 + $0x8] sm:$0xff] %v2433
    %2440 = vst [vmem:[#allocation2 + $0x10] sm:$0xff] %v2434
    %2441 = vst [vmem:[#allocation2 + $0x18] sm:$0xff] %v2435
    %2442 = vst [vmem:[#allocation2 + $0x20] sm:$0xff] %v2436
    %2443 = vst [vmem:[#allocation2 + $0x28] sm:$0xff] %v2437
    // Predicated region
    $region14: #{tpu_custom_call.1} parent=1 // pred_check
      _
    $region15: #{tpu_custom_call.1} parent=1 // pred_check_branch
      %2445 = sbr.rel (0) target = $region17
    $region16: #{tpu_custom_call.1} parent=1 // pred_region
      %s2447 = ssub.s32 768, 768
      %2448 = vsyncadd [#allocation3], %s2447
      %s2449 = sshll.u32 [#allocation2], 4
      %s2450 = int_to_ptr.vmem [resolvable:$true] %s2449
      %2455 = dma.vmem_to_hbm [thread:$0]  %s2450, 768, %s3, [#allocation3], 128, 128, 8
    $region17: #{tpu_custom_call.1} parent=1 // pred_fallthru
      _
    // Predicated region
    $region18: #{tpu_custom_call.1} parent=1 // pred_check
      _
    $region19: #{tpu_custom_call.1} parent=1 // pred_check_branch
      %2457 = sbr.rel (0) target = $region21
    $region20: #{tpu_custom_call.1} parent=1 // pred_region
      %2458 = dma.done [#allocation3], 768
    $region21: #{tpu_custom_call.1} parent=1 // pred_fallthru
      _
    %2459 = vsyncpa [#allocation3], 1

</llo_original>
